<compile_context>
chip_gen: v7x
topology: tpu7x:2x2x1
jax: 0.10.0
libtpu: 0.0.40
codegen_flags: <defaults>
</compile_context>

<pallas_src>
import jax
import jax.numpy as jnp
from jax.experimental import pallas as pl
from jax.experimental.pallas import tpu as pltpu


def _round_up(x, m):
    return ((x + m - 1) // m) * m


# Logical dims; hidden/output dims are zero-padded to lane multiples of 128.
N_DIMS, H1, H2, N_OUT = 784, 500, 300, 10
H1_PAD, H2_PAD, OUT_PAD = 512, 384, 128


def _tile_budget():
    """Per-generation batch-tile cap and VMEM limit.

    v5e/v6e have 128 MiB VMEM per TensorCore -> 4096-row tiles fit with room to
    spare; v7x (and unknown chips) get a conservative 2048-row / 48 MiB budget
    since v7x only has 64 MiB per TC.
    """
    try:
        kind = jax.devices()[0].device_kind.lower()
    except Exception:
        kind = ""
    if "v5" in kind or "v6" in kind:
        return 4096, 96 * 1024 * 1024
    return 2048, 48 * 1024 * 1024


def _mlp_kernel(x_ref, w1_ref, b1_ref, w2_ref, b2_ref, w3_ref, b3_ref, o_ref):
    # bf16 MXU inputs, f32 accumulation; bias-add / ReLU in f32 (v5e-safe VPU).
    x = x_ref[...].astype(jnp.bfloat16)
    h1 = jnp.dot(x, w1_ref[...], preferred_element_type=jnp.float32)
    h1 = jnp.maximum(h1 + b1_ref[...], 0.0).astype(jnp.bfloat16)
    h2 = jnp.dot(h1, w2_ref[...], preferred_element_type=jnp.float32)
    h2 = jnp.maximum(h2 + b2_ref[...], 0.0).astype(jnp.bfloat16)
    out = jnp.dot(h2, w3_ref[...], preferred_element_type=jnp.float32)
    o_ref[...] = (out + b3_ref[...]).astype(o_ref.dtype)  # lane-dense (tile_b,128)


def _pad_params(params):
    """Zero-pad only the lane (output) dims; weights -> bf16, biases -> f32.

    w1 keeps its true K=784 so it matches the un-padded x block.
    """
    w1, b1, w2, b2, w3, b3 = params
    w1p = jnp.pad(w1, ((0, 0), (0, H1_PAD - H1))).astype(jnp.bfloat16)
    w2p = jnp.pad(w2, ((0, H1_PAD - H1), (0, H2_PAD - H2))).astype(jnp.bfloat16)
    w3p = jnp.pad(w3, ((0, H2_PAD - H2), (0, OUT_PAD - N_OUT))).astype(jnp.bfloat16)
    b1p = jnp.pad(b1, ((0, 0), (0, H1_PAD - H1))).astype(jnp.float32)
    b2p = jnp.pad(b2, ((0, 0), (0, H2_PAD - H2))).astype(jnp.float32)
    b3p = jnp.pad(b3, ((0, 0), (0, OUT_PAD - N_OUT))).astype(jnp.float32)
    return w1p, b1p, w2p, b2p, w3p, b3p


def simple_fnn_forward(x, params):
    """x: (B, 784) or any shape whose trailing dims flatten to 784."""
    if x.ndim > 2:
        x = x.reshape(-1, N_DIMS)  # mirrors torch `x.view(-1, self.n_dims)`
    B = x.shape[0]

    max_tile_b, vmem_limit = _tile_budget()

    # Balanced tiling, no batch padding: the ragged last block is masked by
    # Pallas (OOB reads feed rows that are discarded; OOB writes are dropped).
    n_steps = max(1, pl.cdiv(B, max_tile_b))
    if n_steps > 1 and n_steps % 2 == 1:
        n_steps += 1  # even grid keeps both v7x TensorCores busy
    tile_b = min(max_tile_b, _round_up(pl.cdiv(B, n_steps), 16))
    grid = (pl.cdiv(B, tile_b),)

    w1p, b1p, w2p, b2p, w3p, b3p = _pad_params(params)

    const = lambda shape: pl.BlockSpec(shape, lambda i: (0, 0))  # VMEM-resident

    bytes_accessed = (
        x.size * x.dtype.itemsize + B * OUT_PAD * 4
        + (w1p.size + w2p.size + w3p.size) * 2
        + (b1p.size + b2p.size + b3p.size) * 4
    )
    flops = 2 * B * (N_DIMS * H1_PAD + H1_PAD * H2_PAD + H2_PAD * OUT_PAD)

    out = pl.pallas_call(
        _mlp_kernel,
        out_shape=jax.ShapeDtypeStruct((B, OUT_PAD), jnp.float32),
        grid=grid,
        in_specs=[
            pl.BlockSpec((tile_b, N_DIMS), lambda i: (i, 0)),   # x: batch-tiled, no pad
            const((N_DIMS, H1_PAD)),                            # w1
            const((1, H1_PAD)),                                 # b1
            const((H1_PAD, H2_PAD)),                            # w2
            const((1, H2_PAD)),                                 # b2
            const((H2_PAD, OUT_PAD)),                           # w3
            const((1, OUT_PAD)),                                # b3
        ],
        out_specs=pl.BlockSpec((tile_b, OUT_PAD), lambda i: (i, 0)),
        compiler_params=pltpu.CompilerParams(
            dimension_semantics=("parallel",),      # shards steps across v7x's 2 TCs
            vmem_limit_bytes=vmem_limit,
        ),
        cost_estimate=pl.CostEstimate(
            flops=flops, transcendentals=0, bytes_accessed=bytes_accessed),
    )(x, w1p, b1p, w2p, b2p, w3p, b3p)

    return out[:, :N_OUT]


def init_params(key, n_dims=784, bias=True, dtype=jnp.float32):
    """Deterministic init mimicking nn.Linear's Kaiming-uniform + uniform bias."""
    dims = [(n_dims, H1), (H1, H2), (H2, N_OUT)]
    params = []
    for (fan_in, fan_out) in dims:
        key, kw, kb = jax.random.split(key, 3)
        bound = 1.0 / jnp.sqrt(fan_in)
        # stored as (in, out); torch stores (out, in) — same distribution, transposed
        w = jax.random.uniform(kw, (fan_in, fan_out), dtype, -bound, bound)
        if bias:
            b = jax.random.uniform(kb, (1, fan_out), dtype, -bound, bound)
        else:
            b = jnp.zeros((1, fan_out), dtype)
        params += [w, b]
    return tuple(params)


def _reference(x, params):
    """Pure-JAX reference mirroring the kernel's bf16-input / f32-accum numerics."""
    w1, b1, w2, b2, w3, b3 = params
    if x.ndim > 2:
        x = x.reshape(-1, N_DIMS)
    xb = x.astype(jnp.bfloat16)
    h1 = jnp.maximum(
        jnp.dot(xb, w1.astype(jnp.bfloat16), preferred_element_type=jnp.float32) + b1,
        0.0).astype(jnp.bfloat16)
    h2 = jnp.maximum(
        jnp.dot(h1, w2.astype(jnp.bfloat16), preferred_element_type=jnp.float32) + b2,
        0.0).astype(jnp.bfloat16)
    return jnp.dot(h2, w3.astype(jnp.bfloat16),
                   preferred_element_type=jnp.float32) + b3


if __name__ == "__main__":
    key = jax.random.PRNGKey(0)
    kx, kp = jax.random.split(key)

    # Small MNIST-like input: (batch=2, channels=1, 28, 28) -> flattened to (2, 784)
    x = jax.random.normal(kx, (2, 1, 28, 28), dtype=jnp.float32)
    params = init_params(kp, n_dims=N_DIMS, bias=True)

    out = simple_fnn_forward(x, params)
    out = jax.block_until_ready(out)

    ref = _reference(x, params)
    assert out.shape == (2, 10), out.shape
    assert jnp.allclose(out, ref, atol=1e-2, rtol=1e-2), "mismatch vs reference"

    print("KERNEL_OK")
</pallas_src>

<mosaic_0001>
module attributes {stable_mosaic.version = 11 : i64} {
  func.func @_mlp_kernel(%arg0: i32, %arg1: memref<16x784xf32, #tpu.memory_space<vmem>>, %arg2: memref<784x512xbf16, #tpu.memory_space<vmem>>, %arg3: memref<1x512xf32, #tpu.memory_space<vmem>>, %arg4: memref<512x384xbf16, #tpu.memory_space<vmem>>, %arg5: memref<1x384xf32, #tpu.memory_space<vmem>>, %arg6: memref<384x128xbf16, #tpu.memory_space<vmem>>, %arg7: memref<1x128xf32, #tpu.memory_space<vmem>>, %arg8: memref<16x128xf32, #tpu.memory_space<vmem>>) attributes {dimension_semantics = [#tpu.dimension_semantics<parallel>], iteration_bounds = array<i64: 1>, scalar_prefetch = 0 : i64, scratch_operands = 0 : i64, tpu.core_type = #tpu.core_type<tc>, window_params = [{transform_indices = @transform_0, window_bounds = array<i64: 16, 784>}, {pipeline_mode = #tpu.pipeline_mode<synchronous>, transform_indices = @transform_1, window_bounds = array<i64: 784, 512>}, {pipeline_mode = #tpu.pipeline_mode<synchronous>, transform_indices = @transform_2, window_bounds = array<i64: 1, 512>}, {pipeline_mode = #tpu.pipeline_mode<synchronous>, transform_indices = @transform_3, window_bounds = array<i64: 512, 384>}, {pipeline_mode = #tpu.pipeline_mode<synchronous>, transform_indices = @transform_4, window_bounds = array<i64: 1, 384>}, {pipeline_mode = #tpu.pipeline_mode<synchronous>, transform_indices = @transform_5, window_bounds = array<i64: 384, 128>}, {pipeline_mode = #tpu.pipeline_mode<synchronous>, transform_indices = @transform_6, window_bounds = array<i64: 1, 128>}, {transform_indices = @transform_7, window_bounds = array<i64: 16, 128>}]} {
    %c0 = arith.constant 0 : index
    %c0_0 = arith.constant 0 : index
    %0 = vector.load %arg1[%c0, %c0_0] : memref<16x784xf32, #tpu.memory_space<vmem>>, vector<16x784xf32>
    %1 = arith.truncf %0 : vector<16x784xf32> to vector<16x784xbf16>
    %c0_1 = arith.constant 0 : index
    %c0_2 = arith.constant 0 : index
    %2 = vector.load %arg2[%c0_1, %c0_2] : memref<784x512xbf16, #tpu.memory_space<vmem>>, vector<784x512xbf16>
    %cst = arith.constant dense<0.000000e+00> : vector<16x512xf32>
    %3 = tpu.matmul %1, %2, %cst {dimension_numbers = #tpu.dot_dimension_numbers<[1], [0], [0], [1], [0, 0, 1, 1], [], []>} : vector<16x784xbf16>, vector<784x512xbf16>, vector<16x512xf32> -> vector<16x512xf32>
    %c0_3 = arith.constant 0 : index
    %c0_4 = arith.constant 0 : index
    %4 = vector.load %arg3[%c0_3, %c0_4] : memref<1x512xf32, #tpu.memory_space<vmem>>, vector<1x512xf32>
    %5 = vector.broadcast %4 : vector<1x512xf32> to vector<16x512xf32>
    %6 = arith.addf %3, %5 : vector<16x512xf32>
    %cst_5 = arith.constant 0.000000e+00 : f32
    %7 = vector.broadcast %cst_5 : f32 to vector<16x512xf32>
    %8 = arith.maximumf %6, %7 : vector<16x512xf32>
    %9 = arith.truncf %8 : vector<16x512xf32> to vector<16x512xbf16>
    %c0_6 = arith.constant 0 : index
    %c0_7 = arith.constant 0 : index
    %10 = vector.load %arg4[%c0_6, %c0_7] : memref<512x384xbf16, #tpu.memory_space<vmem>>, vector<512x384xbf16>
    %cst_8 = arith.constant dense<0.000000e+00> : vector<16x384xf32>
    %11 = tpu.matmul %9, %10, %cst_8 {dimension_numbers = #tpu.dot_dimension_numbers<[1], [0], [0], [1], [0, 0, 1, 1], [], []>} : vector<16x512xbf16>, vector<512x384xbf16>, vector<16x384xf32> -> vector<16x384xf32>
    %c0_9 = arith.constant 0 : index
    %c0_10 = arith.constant 0 : index
    %12 = vector.load %arg5[%c0_9, %c0_10] : memref<1x384xf32, #tpu.memory_space<vmem>>, vector<1x384xf32>
    %13 = vector.broadcast %12 : vector<1x384xf32> to vector<16x384xf32>
    %14 = arith.addf %11, %13 : vector<16x384xf32>
    %cst_11 = arith.constant 0.000000e+00 : f32
    %15 = vector.broadcast %cst_11 : f32 to vector<16x384xf32>
    %16 = arith.maximumf %14, %15 : vector<16x384xf32>
    %17 = arith.truncf %16 : vector<16x384xf32> to vector<16x384xbf16>
    %c0_12 = arith.constant 0 : index
    %c0_13 = arith.constant 0 : index
    %18 = vector.load %arg6[%c0_12, %c0_13] : memref<384x128xbf16, #tpu.memory_space<vmem>>, vector<384x128xbf16>
    %cst_14 = arith.constant dense<0.000000e+00> : vector<16x128xf32>
    %19 = tpu.matmul %17, %18, %cst_14 {dimension_numbers = #tpu.dot_dimension_numbers<[1], [0], [0], [1], [0, 0, 1, 1], [], []>} : vector<16x384xbf16>, vector<384x128xbf16>, vector<16x128xf32> -> vector<16x128xf32>
    %c0_15 = arith.constant 0 : index
    %c0_16 = arith.constant 0 : index
    %20 = vector.load %arg7[%c0_15, %c0_16] : memref<1x128xf32, #tpu.memory_space<vmem>>, vector<1x128xf32>
    %21 = vector.broadcast %20 : vector<1x128xf32> to vector<16x128xf32>
    %22 = arith.addf %19, %21 : vector<16x128xf32>
    %c0_17 = arith.constant 0 : index
    %c0_18 = arith.constant 0 : index
    %23 = vector.load %arg8[%c0_17, %c0_18] : memref<16x128xf32, #tpu.memory_space<vmem>>, vector<16x128xf32>
    tpu.vector_store %arg8[%c0_17, %c0_18], %22 {strides = array<i32>} : memref<16x128xf32, #tpu.memory_space<vmem>>, vector<16x128xf32>,
    return
  }
  func.func @transform_0(%arg0: i32) -> (i32, i32) {
    %c0_i32 = arith.constant 0 : i32
    %c0_i32_0 = arith.constant 0 : i32
    return %arg0, %c0_i32 : i32, i32
  }
  func.func @transform_1(%arg0: i32) -> (i32, i32) {
    %c0_i32 = arith.constant 0 : i32
    %c0_i32_0 = arith.constant 0 : i32
    %c0_i32_1 = arith.constant 0 : i32
    return %c0_i32, %c0_i32_0 : i32, i32
  }
  func.func @transform_2(%arg0: i32) -> (i32, i32) {
    %c0_i32 = arith.constant 0 : i32
    %c0_i32_0 = arith.constant 0 : i32
    %c0_i32_1 = arith.constant 0 : i32
    return %c0_i32, %c0_i32_0 : i32, i32
  }
  func.func @transform_3(%arg0: i32) -> (i32, i32) {
    %c0_i32 = arith.constant 0 : i32
    %c0_i32_0 = arith.constant 0 : i32
    %c0_i32_1 = arith.constant 0 : i32
    return %c0_i32, %c0_i32_0 : i32, i32
  }
  func.func @transform_4(%arg0: i32) -> (i32, i32) {
    %c0_i32 = arith.constant 0 : i32
    %c0_i32_0 = arith.constant 0 : i32
    %c0_i32_1 = arith.constant 0 : i32
    return %c0_i32, %c0_i32_0 : i32, i32
  }
  func.func @transform_5(%arg0: i32) -> (i32, i32) {
    %c0_i32 = arith.constant 0 : i32
    %c0_i32_0 = arith.constant 0 : i32
    %c0_i32_1 = arith.constant 0 : i32
    return %c0_i32, %c0_i32_0 : i32, i32
  }
  func.func @transform_6(%arg0: i32) -> (i32, i32) {
    %c0_i32 = arith.constant 0 : i32
    %c0_i32_0 = arith.constant 0 : i32
    %c0_i32_1 = arith.constant 0 : i32
    return %c0_i32, %c0_i32_0 : i32, i32
  }
  func.func @transform_7(%arg0: i32) -> (i32, i32) {
    %c0_i32 = arith.constant 0 : i32
    %c0_i32_0 = arith.constant 0 : i32
    return %arg0, %c0_i32 : i32, i32
  }
}

</mosaic_0001>

<llo_original>
// kernel: tpu_custom_call.1
$region0: #{tpu_custom_call.1}
  #allocation0 [shape = 'u32[]', space=smem, size = 0x4, offset = 0x4, fixed_abs, tag = 'smem constant byte address 0x4 - core index']
  #allocation1 [shape = 'u32[144,128]{1,0:T(1,128)}', space=vmem, size = 0x12000, scoped, tag = 'internal scratch']
  %s0 = inlined_call_operand.hbm [shape: f32[2,784], index: 0, kind: input, shape index: {}]
  %s1 = inlined_call_operand.hbm [shape: bf16[784,512], index: 1, kind: input, shape index: {}]
  %s2 = inlined_call_operand.vmem [shape: f32[1,512], index: 2, kind: input, shape index: {}]
  %s3 = inlined_call_operand.hbm [shape: bf16[512,384], index: 3, kind: input, shape index: {}]
  %s4 = inlined_call_operand.vmem [shape: f32[1,384], index: 4, kind: input, shape index: {}]
  %s5 = inlined_call_operand.hbm [shape: bf16[384,128], index: 5, kind: input, shape index: {}]
  %s6 = inlined_call_operand.vmem [shape: f32[1,128], index: 6, kind: input, shape index: {}]
  %s7 = inlined_call_operand.hbm [shape: f32[2,128], index: 7, kind: output, shape index: {}]
  %s8 = sld [smem:[#allocation0]]
  $region54: #{tpu_custom_call.1} parent=0
    _
  %s10 = ssub.s32 1, %s8
  %s11 = scalar_select 0, %s10, %s8
  $region1: #{tpu_custom_call.1} parent=0
    #allocation2 [shape = 'u8[57344]{0}', space=vmem, size = 0xe000, scoped, tag = 'input window, operand 0, single buffered']
    #allocation3 [shape = 's32[1]{0}', space=sflag, size = 0x4, scoped, tag = 'scoped memory for tpu_custom_call.1']
    #allocation4 [shape = 's32[1]{0}', space=sflag, size = 0x4, scoped, tag = 'scoped memory for tpu_custom_call.1']
    #allocation5 [shape = 'u8[802816]{0}', space=vmem, size = 0xc4000, scoped, tag = 'input window, operand 1, single buffered']
    #allocation6 [shape = 's32[1]{0}', space=sflag, size = 0x4, scoped, tag = 'scoped memory for tpu_custom_call.1']
    #allocation7 [shape = 'u8[393216]{0}', space=vmem, size = 0x60000, scoped, tag = 'input window, operand 3, single buffered']
    #allocation8 [shape = 'u8[98304]{0}', space=vmem, size = 0x18000, scoped, tag = 'input window, operand 5, single buffered']
    #allocation9 [shape = 's32[1]{0}', space=sflag, size = 0x4, scoped, tag = 'scoped memory for tpu_custom_call.1']
    #allocation10 [shape = 'u8[8192]{0}', space=vmem, size = 0x2000, scoped, tag = 'output window, operand 0, single buffered']
    %12 = vsyncpa [#allocation3], 0
    %13 = vsyncpa [#allocation6], 0
    %14 = vsyncpa [#allocation9], 0
    %15 = vsyncpa [#allocation4], 0
    // Predicated region
    $region2: #{tpu_custom_call.1} parent=1 // pred_check
      _
    $region3: #{tpu_custom_call.1} parent=1 // pred_check_branch
      %17 = sbr.rel (0) target = $region5
    $region4: #{tpu_custom_call.1} parent=1 // pred_region
      %s19 = ssub.s32 1792, 224
      %20 = vsyncadd [#allocation3], %s19
      %s21 = sshll.u32 [#allocation2], 4
      %s22 = int_to_ptr.vmem [resolvable:$true] %s21
      %27 = dma.hbm_to_vmem [thread:$0]  %s0, 224, %s22, [#allocation3], 224, 224, 14
    $region5: #{tpu_custom_call.1} parent=1 // pred_fallthru
      _
    // Predicated region
    $region6: #{tpu_custom_call.1} parent=1 // pred_check
      _
    $region7: #{tpu_custom_call.1} parent=1 // pred_check_branch
      %29 = sbr.rel (0) target = $region9
    $region8: #{tpu_custom_call.1} parent=1 // pred_region
      %s31 = ssub.s32 25088, 25088
      %32 = vsyncadd [#allocation6], %s31
      %s33 = sshll.u32 [#allocation5], 4
      %s34 = int_to_ptr.vmem [resolvable:$true] %s33
      %39 = dma.hbm_to_vmem [thread:$0]  %s1, 25088, %s34, [#allocation6], 256, 256, 16
    $region9: #{tpu_custom_call.1} parent=1 // pred_fallthru
      _
    // Predicated region
    $region10: #{tpu_custom_call.1} parent=1 // pred_check
      _
    $region11: #{tpu_custom_call.1} parent=1 // pred_check_branch
      %41 = sbr.rel (0) target = $region13
    $region12: #{tpu_custom_call.1} parent=1 // pred_region
      _
    $region13: #{tpu_custom_call.1} parent=1 // pred_fallthru
      _
    // Predicated region
    $region14: #{tpu_custom_call.1} parent=1 // pred_check
      _
    $region15: #{tpu_custom_call.1} parent=1 // pred_check_branch
      %43 = sbr.rel (0) target = $region17
    $region16: #{tpu_custom_call.1} parent=1 // pred_region
      %s45 = ssub.s32 12288, 12288
      %46 = vsyncadd [#allocation6], %s45
      %s47 = sshll.u32 [#allocation7], 4
      %s48 = int_to_ptr.vmem [resolvable:$true] %s47
      %53 = dma.hbm_to_vmem [thread:$0]  %s3, 12288, %s48, [#allocation6], 192, 192, 12
    $region17: #{tpu_custom_call.1} parent=1 // pred_fallthru
      _
    // Predicated region
    $region18: #{tpu_custom_call.1} parent=1 // pred_check
      _
    $region19: #{tpu_custom_call.1} parent=1 // pred_check_branch
      %55 = sbr.rel (0) target = $region21
    $region20: #{tpu_custom_call.1} parent=1 // pred_region
      _
    $region21: #{tpu_custom_call.1} parent=1 // pred_fallthru
      _
    // Predicated region
    $region22: #{tpu_custom_call.1} parent=1 // pred_check
      _
    $region23: #{tpu_custom_call.1} parent=1 // pred_check_branch
      %57 = sbr.rel (0) target = $region25
    $region24: #{tpu_custom_call.1} parent=1 // pred_region
      %s59 = ssub.s32 3072, 3072
      %60 = vsyncadd [#allocation9], %s59
      %s61 = sshll.u32 [#allocation8], 4
      %s62 = int_to_ptr.vmem [resolvable:$true] %s61
      %67 = dma.hbm_to_vmem [thread:$0]  %s5, 3072, %s62, [#allocation9], 64, 64, 4
    $region25: #{tpu_custom_call.1} parent=1 // pred_fallthru
      _
    // Predicated region
    $region26: #{tpu_custom_call.1} parent=1 // pred_check
      _
    $region27: #{tpu_custom_call.1} parent=1 // pred_check_branch
      %69 = sbr.rel (0) target = $region29
    $region28: #{tpu_custom_call.1} parent=1 // pred_region
      _
    $region29: #{tpu_custom_call.1} parent=1 // pred_fallthru
      _
    // Predicated region
    $region30: #{tpu_custom_call.1} parent=1 // pred_check
      _
    $region31: #{tpu_custom_call.1} parent=1 // pred_check_branch
      %71 = sbr.rel (0) target = $region33
    $region32: #{tpu_custom_call.1} parent=1 // pred_region
      %72 = dma.done [#allocation3], 1792
    $region33: #{tpu_custom_call.1} parent=1 // pred_fallthru
      _
    // Predicated region
    $region34: #{tpu_custom_call.1} parent=1 // pred_check
      _
    $region35: #{tpu_custom_call.1} parent=1 // pred_check_branch
      %74 = sbr.rel (0) target = $region37
    $region36: #{tpu_custom_call.1} parent=1 // pred_region
      %75 = dma.done [#allocation6], 25088
    $region37: #{tpu_custom_call.1} parent=1 // pred_fallthru
      _
    // Predicated region
    $region38: #{tpu_custom_call.1} parent=1 // pred_check
      _
    $region39: #{tpu_custom_call.1} parent=1 // pred_check_branch
      %77 = sbr.rel (0) target = $region41
    $region40: #{tpu_custom_call.1} parent=1 // pred_region
      %78 = dma.done [#allocation6], 12288
    $region41: #{tpu_custom_call.1} parent=1 // pred_fallthru
      _
    // Predicated region
    $region42: #{tpu_custom_call.1} parent=1 // pred_check
      _
    $region43: #{tpu_custom_call.1} parent=1 // pred_check_branch
      %80 = sbr.rel (0) target = $region45
    $region44: #{tpu_custom_call.1} parent=1 // pred_region
      %81 = dma.done [#allocation9], 3072
    $region45: #{tpu_custom_call.1} parent=1 // pred_fallthru
      _
    %v83 = vld [vmem:[#allocation2] sm:$0xff]
    %v84 = vld [vmem:[#allocation2 + $0x8] sm:$0x3f]
    %v85 = vld [vmem:[#allocation2 + $0xe] sm:$0xff]
    %v86 = vld [vmem:[#allocation2 + $0x16] sm:$0x3f]
    %v87 = vld [vmem:[#allocation2 + $0x1c] sm:$0xff]
    %v88 = vld [vmem:[#allocation2 + $0x24] sm:$0x3f]
    %v89 = vld [vmem:[#allocation2 + $0x2a] sm:$0xff]
    %v90 = vld [vmem:[#allocation2 + $0x32] sm:$0x3f]
    %v91 = vld [vmem:[#allocation2 + $0x38] sm:$0xff]
    %v92 = vld [vmem:[#allocation2 + $0x40] sm:$0x3f]
    %v93 = vld [vmem:[#allocation2 + $0x46] sm:$0xff]
    %v94 = vld [vmem:[#allocation2 + $0x4e] sm:$0x3f]
    %v95 = vld [vmem:[#allocation2 + $0x54] sm:$0xff]
    %v96 = vld [vmem:[#allocation2 + $0x5c] sm:$0x3f]
    %v97 = vld [vmem:[#allocation2 + $0x62] sm:$0xff]
    %v98 = vld [vmem:[#allocation2 + $0x6a] sm:$0x3f]
    %v115 = vcombine.low %v83, %v85
    %v116 = vcombine.high %v83, %v85
    %v117 = vcombine.low %v87, %v89
    %v118 = vcombine.high %v87, %v89
    %v120 = vunpack.c.l.s4 1983009808
    %v121 = vunpack.c.0.s8 %v120
    %v122 = vlaneseq
    %v123 = vshrl.u32 %v122, 7
    %v124 = vsub.s32 %v121, %v123
    %v125 = vrot.slane %v115, %v124
    %v127 = vunpack.c.l.s4 1983009808
    %v128 = vunpack.c.0.s8 %v127
    %v129 = vlaneseq
    %v130 = vshrl.u32 %v129, 7
    %v131 = vsub.s32 %v128, %v130
    %v132 = vrot.slane %v116, %v131
    %v134 = vunpack.c.l.s4 1983009808
    %v135 = vunpack.c.0.s8 %v134
    %v136 = vlaneseq
    %v137 = vshrl.u32 %v136, 7
    %v138 = vsub.s32 %v135, %v137
    %v139 = vrot.slane %v117, %v138
    %v141 = vunpack.c.l.s4 1983009808
    %v142 = vunpack.c.0.s8 %v141
    %v143 = vlaneseq
    %v144 = vshrl.u32 %v143, 7
    %v145 = vsub.s32 %v142, %v144
    %v146 = vrot.slane %v118, %v145
    %v147 = vcombine.low %v125, %v139
    %v148 = vcombine.high %v125, %v139
    %v149 = vcombine.low %v132, %v146
    %v150 = vcombine.high %v132, %v146
    %v151 = vcombine.low %v84, %v86
    %v152 = vcombine.high %v84, %v86
    %v153 = vcombine.low %v88, %v90
    %v154 = vcombine.high %v88, %v90
    %v156 = vunpack.c.l.s4 1983009808
    %v157 = vunpack.c.0.s8 %v156
    %v158 = vlaneseq
    %v159 = vshrl.u32 %v158, 7
    %v160 = vsub.s32 %v157, %v159
    %v161 = vrot.slane %v151, %v160
    %v163 = vunpack.c.l.s4 1983009808
    %v164 = vunpack.c.0.s8 %v163
    %v165 = vlaneseq
    %v166 = vshrl.u32 %v165, 7
    %v167 = vsub.s32 %v164, %v166
    %v168 = vrot.slane %v152, %v167
    %v170 = vunpack.c.l.s4 1983009808
    %v171 = vunpack.c.0.s8 %v170
    %v172 = vlaneseq
    %v173 = vshrl.u32 %v172, 7
    %v174 = vsub.s32 %v171, %v173
    %v175 = vrot.slane %v153, %v174
    %v177 = vunpack.c.l.s4 1983009808
    %v178 = vunpack.c.0.s8 %v177
    %v179 = vlaneseq
    %v180 = vshrl.u32 %v179, 7
    %v181 = vsub.s32 %v178, %v180
    %v182 = vrot.slane %v154, %v181
    %v183 = vcombine.low %v161, %v175
    %v184 = vcombine.high %v161, %v175
    %v185 = vcombine.low %v168, %v182
    %v186 = vcombine.low %v91, %v93
    %v187 = vcombine.high %v91, %v93
    %v188 = vcombine.low %v95, %v97
    %v189 = vcombine.high %v95, %v97
    %v191 = vunpack.c.l.s4 1983009808
    %v192 = vunpack.c.0.s8 %v191
    %v193 = vlaneseq
    %v194 = vshrl.u32 %v193, 7
    %v195 = vsub.s32 %v192, %v194
    %v196 = vrot.slane %v186, %v195
    %v198 = vunpack.c.l.s4 1983009808
    %v199 = vunpack.c.0.s8 %v198
    %v200 = vlaneseq
    %v201 = vshrl.u32 %v200, 7
    %v202 = vsub.s32 %v199, %v201
    %v203 = vrot.slane %v187, %v202
    %v205 = vunpack.c.l.s4 1983009808
    %v206 = vunpack.c.0.s8 %v205
    %v207 = vlaneseq
    %v208 = vshrl.u32 %v207, 7
    %v209 = vsub.s32 %v206, %v208
    %v210 = vrot.slane %v188, %v209
    %v212 = vunpack.c.l.s4 1983009808
    %v213 = vunpack.c.0.s8 %v212
    %v214 = vlaneseq
    %v215 = vshrl.u32 %v214, 7
    %v216 = vsub.s32 %v213, %v215
    %v217 = vrot.slane %v189, %v216
    %v218 = vcombine.low %v196, %v210
    %v219 = vcombine.high %v196, %v210
    %v220 = vcombine.low %v203, %v217
    %v221 = vcombine.high %v203, %v217
    %v222 = vcombine.low %v92, %v94
    %v223 = vcombine.high %v92, %v94
    %v224 = vcombine.low %v96, %v98
    %v225 = vcombine.high %v96, %v98
    %v227 = vunpack.c.l.s4 1983009808
    %v228 = vunpack.c.0.s8 %v227
    %v229 = vlaneseq
    %v230 = vshrl.u32 %v229, 7
    %v231 = vsub.s32 %v228, %v230
    %v232 = vrot.slane %v222, %v231
    %v234 = vunpack.c.l.s4 1983009808
    %v235 = vunpack.c.0.s8 %v234
    %v236 = vlaneseq
    %v237 = vshrl.u32 %v236, 7
    %v238 = vsub.s32 %v235, %v237
    %v239 = vrot.slane %v223, %v238
    %v241 = vunpack.c.l.s4 1983009808
    %v242 = vunpack.c.0.s8 %v241
    %v243 = vlaneseq
    %v244 = vshrl.u32 %v243, 7
    %v245 = vsub.s32 %v242, %v244
    %v246 = vrot.slane %v224, %v245
    %v248 = vunpack.c.l.s4 1983009808
    %v249 = vunpack.c.0.s8 %v248
    %v250 = vlaneseq
    %v251 = vshrl.u32 %v250, 7
    %v252 = vsub.s32 %v249, %v251
    %v253 = vrot.slane %v225, %v252
    %v254 = vcombine.low %v232, %v246
    %v255 = vcombine.high %v232, %v246
    %v256 = vcombine.low %v239, %v253
    %v271 = vpack.c.bf16 %v218, %v147
    %v272 = vpack.c.bf16 %v219, %v148
    %v273 = vpack.c.bf16 %v220, %v149
    %v274 = vpack.c.bf16 %v221, %v150
    %v275 = vpack.c.bf16 %v254, %v183
    %v276 = vpack.c.bf16 %v255, %v184
    %v277 = vpack.c.bf16 %v256, %v185
    %v278 = vld [vmem:[#allocation5] sm:$0xff]
    %v279 = vld [vmem:[#allocation5 + $0x8] sm:$0xff]
    %v280 = vld [vmem:[#allocation5 + $0x10] sm:$0xff]
    %v281 = vld [vmem:[#allocation5 + $0x18] sm:$0xff]
    %v282 = vld [vmem:[#allocation5 + $0x20] sm:$0xff]
    %v283 = vld [vmem:[#allocation5 + $0x28] sm:$0xff]
    %v284 = vld [vmem:[#allocation5 + $0x30] sm:$0xff]
    %v285 = vld [vmem:[#allocation5 + $0x38] sm:$0xff]
    %v286 = vld [vmem:[#allocation5 + $0x40] sm:$0xff]
    %v287 = vld [vmem:[#allocation5 + $0x48] sm:$0xff]
    %v288 = vld [vmem:[#allocation5 + $0x50] sm:$0xff]
    %v289 = vld [vmem:[#allocation5 + $0x58] sm:$0xff]
    %v290 = vld [vmem:[#allocation5 + $0x60] sm:$0xff]
    %v291 = vld [vmem:[#allocation5 + $0x68] sm:$0xff]
    %v292 = vld [vmem:[#allocation5 + $0x70] sm:$0xff]
    %v293 = vld [vmem:[#allocation5 + $0x78] sm:$0xff]
    %v294 = vld [vmem:[#allocation5 + $0x80] sm:$0xff]
    %v295 = vld [vmem:[#allocation5 + $0x88] sm:$0xff]
    %v296 = vld [vmem:[#allocation5 + $0x90] sm:$0xff]
    %v297 = vld [vmem:[#allocation5 + $0x98] sm:$0xff]
    %v298 = vld [vmem:[#allocation5 + $0xa0] sm:$0xff]
    %v299 = vld [vmem:[#allocation5 + $0xa8] sm:$0xff]
    %v300 = vld [vmem:[#allocation5 + $0xb0] sm:$0xff]
    %v301 = vld [vmem:[#allocation5 + $0xb8] sm:$0xff]
    %v302 = vld [vmem:[#allocation5 + $0xc0] sm:$0xff]
    %v303 = vld [vmem:[#allocation5 + $0xc8] sm:$0xff]
    %v304 = vld [vmem:[#allocation5 + $0xd0] sm:$0xff]
    %v305 = vld [vmem:[#allocation5 + $0xd8] sm:$0xff]
    %v306 = vld [vmem:[#allocation5 + $0xe0] sm:$0xff]
    %v307 = vld [vmem:[#allocation5 + $0xe8] sm:$0xff]
    %v308 = vld [vmem:[#allocation5 + $0xf0] sm:$0xff]
    %v309 = vld [vmem:[#allocation5 + $0xf8] sm:$0xff]
    %v310 = vld [vmem:[#allocation5 + $0x100] sm:$0xff]
    %v311 = vld [vmem:[#allocation5 + $0x108] sm:$0xff]
    %v312 = vld [vmem:[#allocation5 + $0x110] sm:$0xff]
    %v313 = vld [vmem:[#allocation5 + $0x118] sm:$0xff]
    %v314 = vld [vmem:[#allocation5 + $0x120] sm:$0xff]
    %v315 = vld [vmem:[#allocation5 + $0x128] sm:$0xff]
    %v316 = vld [vmem:[#allocation5 + $0x130] sm:$0xff]
    %v317 = vld [vmem:[#allocation5 + $0x138] sm:$0xff]
    %v318 = vld [vmem:[#allocation5 + $0x140] sm:$0xff]
    %v319 = vld [vmem:[#allocation5 + $0x148] sm:$0xff]
    %v320 = vld [vmem:[#allocation5 + $0x150] sm:$0xff]
    %v321 = vld [vmem:[#allocation5 + $0x158] sm:$0xff]
    %v322 = vld [vmem:[#allocation5 + $0x160] sm:$0xff]
    %v323 = vld [vmem:[#allocation5 + $0x168] sm:$0xff]
    %v324 = vld [vmem:[#allocation5 + $0x170] sm:$0xff]
    %v325 = vld [vmem:[#allocation5 + $0x178] sm:$0xff]
    %v326 = vld [vmem:[#allocation5 + $0x180] sm:$0xff]
    %v327 = vld [vmem:[#allocation5 + $0x188] sm:$0xff]
    %v328 = vld [vmem:[#allocation5 + $0x190] sm:$0xff]
    %v329 = vld [vmem:[#allocation5 + $0x198] sm:$0xff]
    %v330 = vld [vmem:[#allocation5 + $0x1a0] sm:$0xff]
    %v331 = vld [vmem:[#allocation5 + $0x1a8] sm:$0xff]
    %v332 = vld [vmem:[#allocation5 + $0x1b0] sm:$0xff]
    %v333 = vld [vmem:[#allocation5 + $0x1b8] sm:$0xff]
    %v334 = vld [vmem:[#allocation5 + $0x1c0] sm:$0xff]
    %v335 = vld [vmem:[#allocation5 + $0x1c8] sm:$0xff]
    %v336 = vld [vmem:[#allocation5 + $0x1d0] sm:$0xff]
    %v337 = vld [vmem:[#allocation5 + $0x1d8] sm:$0xff]
    %v338 = vld [vmem:[#allocation5 + $0x1e0] sm:$0xff]
    %v339 = vld [vmem:[#allocation5 + $0x1e8] sm:$0xff]
    %v340 = vld [vmem:[#allocation5 + $0x1f0] sm:$0xff]
    %v341 = vld [vmem:[#allocation5 + $0x1f8] sm:$0xff]
    %v342 = vld [vmem:[#allocation5 + $0x200] sm:$0xff]
    %v343 = vld [vmem:[#allocation5 + $0x208] sm:$0xff]
    %v344 = vld [vmem:[#allocation5 + $0x210] sm:$0xff]
    %v345 = vld [vmem:[#allocation5 + $0x218] sm:$0xff]
    %v346 = vld [vmem:[#allocation5 + $0x220] sm:$0xff]
    %v347 = vld [vmem:[#allocation5 + $0x228] sm:$0xff]
    %v348 = vld [vmem:[#allocation5 + $0x230] sm:$0xff]
    %v349 = vld [vmem:[#allocation5 + $0x238] sm:$0xff]
    %v350 = vld [vmem:[#allocation5 + $0x240] sm:$0xff]
    %v351 = vld [vmem:[#allocation5 + $0x248] sm:$0xff]
    %v352 = vld [vmem:[#allocation5 + $0x250] sm:$0xff]
    %v353 = vld [vmem:[#allocation5 + $0x258] sm:$0xff]
    %v354 = vld [vmem:[#allocation5 + $0x260] sm:$0xff]
    %v355 = vld [vmem:[#allocation5 + $0x268] sm:$0xff]
    %v356 = vld [vmem:[#allocation5 + $0x270] sm:$0xff]
    %v357 = vld [vmem:[#allocation5 + $0x278] sm:$0xff]
    %v358 = vld [vmem:[#allocation5 + $0x280] sm:$0xff]
    %v359 = vld [vmem:[#allocation5 + $0x288] sm:$0xff]
    %v360 = vld [vmem:[#allocation5 + $0x290] sm:$0xff]
    %v361 = vld [vmem:[#allocation5 + $0x298] sm:$0xff]
    %v362 = vld [vmem:[#allocation5 + $0x2a0] sm:$0xff]
    %v363 = vld [vmem:[#allocation5 + $0x2a8] sm:$0xff]
    %v364 = vld [vmem:[#allocation5 + $0x2b0] sm:$0xff]
    %v365 = vld [vmem:[#allocation5 + $0x2b8] sm:$0xff]
    %v366 = vld [vmem:[#allocation5 + $0x2c0] sm:$0xff]
    %v367 = vld [vmem:[#allocation5 + $0x2c8] sm:$0xff]
    %v368 = vld [vmem:[#allocation5 + $0x2d0] sm:$0xff]
    %v369 = vld [vmem:[#allocation5 + $0x2d8] sm:$0xff]
    %v370 = vld [vmem:[#allocation5 + $0x2e0] sm:$0xff]
    %v371 = vld [vmem:[#allocation5 + $0x2e8] sm:$0xff]
    %v372 = vld [vmem:[#allocation5 + $0x2f0] sm:$0xff]
    %v373 = vld [vmem:[#allocation5 + $0x2f8] sm:$0xff]
    %v374 = vld [vmem:[#allocation5 + $0x300] sm:$0xff]
    %v375 = vld [vmem:[#allocation5 + $0x308] sm:$0xff]
    %v376 = vld [vmem:[#allocation5 + $0x310] sm:$0xff]
    %v377 = vld [vmem:[#allocation5 + $0x318] sm:$0xff]
    %v378 = vld [vmem:[#allocation5 + $0x320] sm:$0xff]
    %v379 = vld [vmem:[#allocation5 + $0x328] sm:$0xff]
    %v380 = vld [vmem:[#allocation5 + $0x330] sm:$0xff]
    %v381 = vld [vmem:[#allocation5 + $0x338] sm:$0xff]
    %v382 = vld [vmem:[#allocation5 + $0x340] sm:$0xff]
    %v383 = vld [vmem:[#allocation5 + $0x348] sm:$0xff]
    %v384 = vld [vmem:[#allocation5 + $0x350] sm:$0xff]
    %v385 = vld [vmem:[#allocation5 + $0x358] sm:$0xff]
    %v386 = vld [vmem:[#allocation5 + $0x360] sm:$0xff]
    %v387 = vld [vmem:[#allocation5 + $0x368] sm:$0xff]
    %v388 = vld [vmem:[#allocation5 + $0x370] sm:$0xff]
    %v389 = vld [vmem:[#allocation5 + $0x378] sm:$0xff]
    %v390 = vld [vmem:[#allocation5 + $0x380] sm:$0xff]
    %v391 = vld [vmem:[#allocation5 + $0x388] sm:$0xff]
    %v392 = vld [vmem:[#allocation5 + $0x390] sm:$0xff]
    %v393 = vld [vmem:[#allocation5 + $0x398] sm:$0xff]
    %v394 = vld [vmem:[#allocation5 + $0x3a0] sm:$0xff]
    %v395 = vld [vmem:[#allocation5 + $0x3a8] sm:$0xff]
    %v396 = vld [vmem:[#allocation5 + $0x3b0] sm:$0xff]
    %v397 = vld [vmem:[#allocation5 + $0x3b8] sm:$0xff]
    %v398 = vld [vmem:[#allocation5 + $0x3c0] sm:$0xff]
    %v399 = vld [vmem:[#allocation5 + $0x3c8] sm:$0xff]
    %v400 = vld [vmem:[#allocation5 + $0x3d0] sm:$0xff]
    %v401 = vld [vmem:[#allocation5 + $0x3d8] sm:$0xff]
    %v402 = vld [vmem:[#allocation5 + $0x3e0] sm:$0xff]
    %v403 = vld [vmem:[#allocation5 + $0x3e8] sm:$0xff]
    %v404 = vld [vmem:[#allocation5 + $0x3f0] sm:$0xff]
    %v405 = vld [vmem:[#allocation5 + $0x3f8] sm:$0xff]
    %v406 = vld [vmem:[#allocation5 + $0x400] sm:$0xff]
    %v407 = vld [vmem:[#allocation5 + $0x408] sm:$0xff]
    %v408 = vld [vmem:[#allocation5 + $0x410] sm:$0xff]
    %v409 = vld [vmem:[#allocation5 + $0x418] sm:$0xff]
    %v410 = vld [vmem:[#allocation5 + $0x420] sm:$0xff]
    %v411 = vld [vmem:[#allocation5 + $0x428] sm:$0xff]
    %v412 = vld [vmem:[#allocation5 + $0x430] sm:$0xff]
    %v413 = vld [vmem:[#allocation5 + $0x438] sm:$0xff]
    %v414 = vld [vmem:[#allocation5 + $0x440] sm:$0xff]
    %v415 = vld [vmem:[#allocation5 + $0x448] sm:$0xff]
    %v416 = vld [vmem:[#allocation5 + $0x450] sm:$0xff]
    %v417 = vld [vmem:[#allocation5 + $0x458] sm:$0xff]
    %v418 = vld [vmem:[#allocation5 + $0x460] sm:$0xff]
    %v419 = vld [vmem:[#allocation5 + $0x468] sm:$0xff]
    %v420 = vld [vmem:[#allocation5 + $0x470] sm:$0xff]
    %v421 = vld [vmem:[#allocation5 + $0x478] sm:$0xff]
    %v422 = vld [vmem:[#allocation5 + $0x480] sm:$0xff]
    %v423 = vld [vmem:[#allocation5 + $0x488] sm:$0xff]
    %v424 = vld [vmem:[#allocation5 + $0x490] sm:$0xff]
    %v425 = vld [vmem:[#allocation5 + $0x498] sm:$0xff]
    %v426 = vld [vmem:[#allocation5 + $0x4a0] sm:$0xff]
    %v427 = vld [vmem:[#allocation5 + $0x4a8] sm:$0xff]
    %v428 = vld [vmem:[#allocation5 + $0x4b0] sm:$0xff]
    %v429 = vld [vmem:[#allocation5 + $0x4b8] sm:$0xff]
    %v430 = vld [vmem:[#allocation5 + $0x4c0] sm:$0xff]
    %v431 = vld [vmem:[#allocation5 + $0x4c8] sm:$0xff]
    %v432 = vld [vmem:[#allocation5 + $0x4d0] sm:$0xff]
    %v433 = vld [vmem:[#allocation5 + $0x4d8] sm:$0xff]
    %v434 = vld [vmem:[#allocation5 + $0x4e0] sm:$0xff]
    %v435 = vld [vmem:[#allocation5 + $0x4e8] sm:$0xff]
    %v436 = vld [vmem:[#allocation5 + $0x4f0] sm:$0xff]
    %v437 = vld [vmem:[#allocation5 + $0x4f8] sm:$0xff]
    %v438 = vld [vmem:[#allocation5 + $0x500] sm:$0xff]
    %v439 = vld [vmem:[#allocation5 + $0x508] sm:$0xff]
    %v440 = vld [vmem:[#allocation5 + $0x510] sm:$0xff]
    %v441 = vld [vmem:[#allocation5 + $0x518] sm:$0xff]
    %v442 = vld [vmem:[#allocation5 + $0x520] sm:$0xff]
    %v443 = vld [vmem:[#allocation5 + $0x528] sm:$0xff]
    %v444 = vld [vmem:[#allocation5 + $0x530] sm:$0xff]
    %v445 = vld [vmem:[#allocation5 + $0x538] sm:$0xff]
    %v446 = vld [vmem:[#allocation5 + $0x540] sm:$0xff]
    %v447 = vld [vmem:[#allocation5 + $0x548] sm:$0xff]
    %v448 = vld [vmem:[#allocation5 + $0x550] sm:$0xff]
    %v449 = vld [vmem:[#allocation5 + $0x558] sm:$0xff]
    %v450 = vld [vmem:[#allocation5 + $0x560] sm:$0xff]
    %v451 = vld [vmem:[#allocation5 + $0x568] sm:$0xff]
    %v452 = vld [vmem:[#allocation5 + $0x570] sm:$0xff]
    %v453 = vld [vmem:[#allocation5 + $0x578] sm:$0xff]
    %v454 = vld [vmem:[#allocation5 + $0x580] sm:$0xff]
    %v455 = vld [vmem:[#allocation5 + $0x588] sm:$0xff]
    %v456 = vld [vmem:[#allocation5 + $0x590] sm:$0xff]
    %v457 = vld [vmem:[#allocation5 + $0x598] sm:$0xff]
    %v458 = vld [vmem:[#allocation5 + $0x5a0] sm:$0xff]
    %v459 = vld [vmem:[#allocation5 + $0x5a8] sm:$0xff]
    %v460 = vld [vmem:[#allocation5 + $0x5b0] sm:$0xff]
    %v461 = vld [vmem:[#allocation5 + $0x5b8] sm:$0xff]
    %v462 = vld [vmem:[#allocation5 + $0x5c0] sm:$0xff]
    %v463 = vld [vmem:[#allocation5 + $0x5c8] sm:$0xff]
    %v464 = vld [vmem:[#allocation5 + $0x5d0] sm:$0xff]
    %v465 = vld [vmem:[#allocation5 + $0x5d8] sm:$0xff]
    %v466 = vld [vmem:[#allocation5 + $0x5e0] sm:$0xff]
    %v467 = vld [vmem:[#allocation5 + $0x5e8] sm:$0xff]
    %v468 = vld [vmem:[#allocation5 + $0x5f0] sm:$0xff]
    %v469 = vld [vmem:[#allocation5 + $0x5f8] sm:$0xff]
    %v470 = vld [vmem:[#allocation5 + $0x600] sm:$0xff]
    %v471 = vld [vmem:[#allocation5 + $0x608] sm:$0xff]
    %v472 = vld [vmem:[#allocation5 + $0x610] sm:$0xff]
    %v473 = vld [vmem:[#allocation5 + $0x618] sm:$0xff]
    %v474 = vld [vmem:[%s2] sm:$0xf]
    %v476 = vlaneseq
    %v477 = vshrl.u32 %v476, 7
    %v478 = vsub.s32 0, %v477
    %v479 = vrot.slane %v474, %v478
    %v480 = vlaneseq
    %v481 = vshrl.u32 %v480, 7
    %v482 = vsub.s32 1, %v481
    %v483 = vrot.slane %v474, %v482
    %v484 = vlaneseq
    %v485 = vshrl.u32 %v484, 7
    %v486 = vsub.s32 2, %v485
    %v487 = vrot.slane %v474, %v486
    %v488 = vlaneseq
    %v489 = vshrl.u32 %v488, 7
    %v490 = vsub.s32 3, %v489
    %v491 = vrot.slane %v474, %v490
    %v692 = vunpack.c.l.b16 %v278
    %v693 = vunpack.c.h.b16 %v278
    %v694 = vunpack.c.l.b16 %v279
    %v695 = vunpack.c.h.b16 %v279
    %v696 = vunpack.c.l.b16 %v280
    %v697 = vunpack.c.h.b16 %v280
    %v698 = vunpack.c.l.b16 %v281
    %v699 = vunpack.c.h.b16 %v281
    %v700 = vunpack.c.l.b16 %v282
    %v701 = vunpack.c.h.b16 %v282
    %v702 = vunpack.c.l.b16 %v283
    %v703 = vunpack.c.h.b16 %v283
    %v704 = vunpack.c.l.b16 %v284
    %v705 = vunpack.c.h.b16 %v284
    %v706 = vunpack.c.l.b16 %v285
    %v707 = vunpack.c.h.b16 %v285
    %v708 = vunpack.c.l.b16 %v286
    %v709 = vunpack.c.h.b16 %v286
    %v710 = vunpack.c.l.b16 %v287
    %v711 = vunpack.c.h.b16 %v287
    %v712 = vunpack.c.l.b16 %v288
    %v713 = vunpack.c.h.b16 %v288
    %v714 = vunpack.c.l.b16 %v289
    %v715 = vunpack.c.h.b16 %v289
    %v716 = vunpack.c.l.b16 %v290
    %v717 = vunpack.c.h.b16 %v290
    %v718 = vunpack.c.l.b16 %v291
    %v719 = vunpack.c.h.b16 %v291
    %v720 = vunpack.c.l.b16 %v292
    %v721 = vunpack.c.h.b16 %v292
    %v722 = vunpack.c.l.b16 %v293
    %v723 = vunpack.c.h.b16 %v293
    %v724 = vunpack.c.l.b16 %v294
    %v725 = vunpack.c.h.b16 %v294
    %v726 = vunpack.c.l.b16 %v295
    %v727 = vunpack.c.h.b16 %v295
    %v728 = vunpack.c.l.b16 %v296
    %v729 = vunpack.c.h.b16 %v296
    %v730 = vunpack.c.l.b16 %v297
    %v731 = vunpack.c.h.b16 %v297
    %v732 = vunpack.c.l.b16 %v298
    %v733 = vunpack.c.h.b16 %v298
    %v734 = vunpack.c.l.b16 %v299
    %v735 = vunpack.c.h.b16 %v299
    %v736 = vunpack.c.l.b16 %v300
    %v737 = vunpack.c.h.b16 %v300
    %v738 = vunpack.c.l.b16 %v301
    %v739 = vunpack.c.h.b16 %v301
    %v740 = vunpack.c.l.b16 %v302
    %v741 = vunpack.c.h.b16 %v302
    %v742 = vunpack.c.l.b16 %v303
    %v743 = vunpack.c.h.b16 %v303
    %v744 = vunpack.c.l.b16 %v304
    %v745 = vunpack.c.h.b16 %v304
    %v746 = vunpack.c.l.b16 %v305
    %v747 = vunpack.c.h.b16 %v305
    %v748 = vunpack.c.l.b16 %v306
    %v749 = vunpack.c.h.b16 %v306
    %v750 = vunpack.c.l.b16 %v307
    %v751 = vunpack.c.h.b16 %v307
    %v752 = vunpack.c.l.b16 %v308
    %v753 = vunpack.c.h.b16 %v308
    %v754 = vunpack.c.l.b16 %v309
    %v755 = vunpack.c.h.b16 %v309
    %v756 = vunpack.c.l.b16 %v310
    %v757 = vunpack.c.h.b16 %v310
    %v758 = vunpack.c.l.b16 %v311
    %v759 = vunpack.c.h.b16 %v311
    %v760 = vunpack.c.l.b16 %v312
    %v761 = vunpack.c.h.b16 %v312
    %v762 = vunpack.c.l.b16 %v313
    %v763 = vunpack.c.h.b16 %v313
    %v764 = vunpack.c.l.b16 %v314
    %v765 = vunpack.c.h.b16 %v314
    %v766 = vunpack.c.l.b16 %v315
    %v767 = vunpack.c.h.b16 %v315
    %v768 = vunpack.c.l.b16 %v316
    %v769 = vunpack.c.h.b16 %v316
    %v770 = vunpack.c.l.b16 %v317
    %v771 = vunpack.c.h.b16 %v317
    %v772 = vunpack.c.l.b16 %v318
    %v773 = vunpack.c.h.b16 %v318
    %v774 = vunpack.c.l.b16 %v319
    %v775 = vunpack.c.h.b16 %v319
    %v776 = vunpack.c.l.b16 %v320
    %v777 = vunpack.c.h.b16 %v320
    %v778 = vunpack.c.l.b16 %v321
    %v779 = vunpack.c.h.b16 %v321
    %v780 = vunpack.c.l.b16 %v322
    %v781 = vunpack.c.h.b16 %v322
    %v782 = vunpack.c.l.b16 %v323
    %v783 = vunpack.c.h.b16 %v323
    %v784 = vunpack.c.l.b16 %v324
    %v785 = vunpack.c.h.b16 %v324
    %v786 = vunpack.c.l.b16 %v325
    %v787 = vunpack.c.h.b16 %v325
    %v788 = vunpack.c.l.b16 %v326
    %v789 = vunpack.c.h.b16 %v326
    %v790 = vunpack.c.l.b16 %v327
    %v791 = vunpack.c.h.b16 %v327
    %v792 = vunpack.c.l.b16 %v328
    %v793 = vunpack.c.h.b16 %v328
    %v794 = vunpack.c.l.b16 %v329
    %v795 = vunpack.c.h.b16 %v329
    %v796 = vunpack.c.l.b16 %v330
    %v797 = vunpack.c.h.b16 %v330
    %v798 = vunpack.c.l.b16 %v331
    %v799 = vunpack.c.h.b16 %v331
    %v800 = vunpack.c.l.b16 %v332
    %v801 = vunpack.c.h.b16 %v332
    %v802 = vunpack.c.l.b16 %v333
    %v803 = vunpack.c.h.b16 %v333
    %v804 = vunpack.c.l.b16 %v334
    %v805 = vunpack.c.h.b16 %v334
    %v806 = vunpack.c.l.b16 %v335
    %v807 = vunpack.c.h.b16 %v335
    %v808 = vunpack.c.l.b16 %v336
    %v809 = vunpack.c.h.b16 %v336
    %v810 = vunpack.c.l.b16 %v337
    %v811 = vunpack.c.h.b16 %v337
    %v812 = vunpack.c.l.b16 %v338
    %v813 = vunpack.c.h.b16 %v338
    %v814 = vunpack.c.l.b16 %v339
    %v815 = vunpack.c.h.b16 %v339
    %v816 = vunpack.c.l.b16 %v340
    %v817 = vunpack.c.h.b16 %v340
    %v818 = vunpack.c.l.b16 %v341
    %v819 = vunpack.c.h.b16 %v341
    %v820 = vunpack.c.l.b16 %v342
    %v821 = vunpack.c.h.b16 %v342
    %v822 = vunpack.c.l.b16 %v343
    %v823 = vunpack.c.h.b16 %v343
    %v824 = vunpack.c.l.b16 %v344
    %v825 = vunpack.c.h.b16 %v344
    %v826 = vunpack.c.l.b16 %v345
    %v827 = vunpack.c.h.b16 %v345
    %v828 = vunpack.c.l.b16 %v346
    %v829 = vunpack.c.h.b16 %v346
    %v830 = vunpack.c.l.b16 %v347
    %v831 = vunpack.c.h.b16 %v347
    %v832 = vunpack.c.l.b16 %v348
    %v833 = vunpack.c.h.b16 %v348
    %v834 = vunpack.c.l.b16 %v349
    %v835 = vunpack.c.h.b16 %v349
    %v836 = vunpack.c.l.b16 %v350
    %v837 = vunpack.c.h.b16 %v350
    %v838 = vunpack.c.l.b16 %v351
    %v839 = vunpack.c.h.b16 %v351
    %v840 = vunpack.c.l.b16 %v352
    %v841 = vunpack.c.h.b16 %v352
    %v842 = vunpack.c.l.b16 %v353
    %v843 = vunpack.c.h.b16 %v353
    %v844 = vunpack.c.l.b16 %v354
    %v845 = vunpack.c.h.b16 %v354
    %v846 = vunpack.c.l.b16 %v355
    %v847 = vunpack.c.h.b16 %v355
    %v848 = vunpack.c.l.b16 %v356
    %v849 = vunpack.c.h.b16 %v356
    %v850 = vunpack.c.l.b16 %v357
    %v851 = vunpack.c.h.b16 %v357
    %v852 = vunpack.c.l.b16 %v358
    %v853 = vunpack.c.h.b16 %v358
    %v854 = vunpack.c.l.b16 %v359
    %v855 = vunpack.c.h.b16 %v359
    %v856 = vunpack.c.l.b16 %v360
    %v857 = vunpack.c.h.b16 %v360
    %v858 = vunpack.c.l.b16 %v361
    %v859 = vunpack.c.h.b16 %v361
    %v860 = vunpack.c.l.b16 %v362
    %v861 = vunpack.c.h.b16 %v362
    %v862 = vunpack.c.l.b16 %v363
    %v863 = vunpack.c.h.b16 %v363
    %v864 = vunpack.c.l.b16 %v364
    %v865 = vunpack.c.h.b16 %v364
    %v866 = vunpack.c.l.b16 %v365
    %v867 = vunpack.c.h.b16 %v365
    %v868 = vunpack.c.l.b16 %v366
    %v869 = vunpack.c.h.b16 %v366
    %v870 = vunpack.c.l.b16 %v367
    %v871 = vunpack.c.h.b16 %v367
    %v872 = vunpack.c.l.b16 %v368
    %v873 = vunpack.c.h.b16 %v368
    %v874 = vunpack.c.l.b16 %v369
    %v875 = vunpack.c.h.b16 %v369
    %v876 = vunpack.c.l.b16 %v370
    %v877 = vunpack.c.h.b16 %v370
    %v878 = vunpack.c.l.b16 %v371
    %v879 = vunpack.c.h.b16 %v371
    %v880 = vunpack.c.l.b16 %v372
    %v881 = vunpack.c.h.b16 %v372
    %v882 = vunpack.c.l.b16 %v373
    %v883 = vunpack.c.h.b16 %v373
    %v884 = vunpack.c.l.b16 %v374
    %v885 = vunpack.c.h.b16 %v374
    %v886 = vunpack.c.l.b16 %v375
    %v887 = vunpack.c.h.b16 %v375
    %v888 = vunpack.c.l.b16 %v376
    %v889 = vunpack.c.h.b16 %v376
    %v890 = vunpack.c.l.b16 %v377
    %v891 = vunpack.c.h.b16 %v377
    %v892 = vunpack.c.l.b16 %v378
    %v893 = vunpack.c.h.b16 %v378
    %v894 = vunpack.c.l.b16 %v379
    %v895 = vunpack.c.h.b16 %v379
    %v896 = vunpack.c.l.b16 %v380
    %v897 = vunpack.c.h.b16 %v380
    %v898 = vunpack.c.l.b16 %v381
    %v899 = vunpack.c.h.b16 %v381
    %v900 = vunpack.c.l.b16 %v382
    %v901 = vunpack.c.h.b16 %v382
    %v902 = vunpack.c.l.b16 %v383
    %v903 = vunpack.c.h.b16 %v383
    %v904 = vunpack.c.l.b16 %v384
    %v905 = vunpack.c.h.b16 %v384
    %v906 = vunpack.c.l.b16 %v385
    %v907 = vunpack.c.h.b16 %v385
    %v908 = vunpack.c.l.b16 %v386
    %v909 = vunpack.c.h.b16 %v386
    %v910 = vunpack.c.l.b16 %v387
    %v911 = vunpack.c.h.b16 %v387
    %v912 = vunpack.c.l.b16 %v388
    %v913 = vunpack.c.h.b16 %v388
    %v914 = vunpack.c.l.b16 %v389
    %v915 = vunpack.c.h.b16 %v389
    %v916 = vunpack.c.l.b16 %v390
    %v917 = vunpack.c.h.b16 %v390
    %v918 = vunpack.c.l.b16 %v391
    %v919 = vunpack.c.h.b16 %v391
    %v920 = vunpack.c.l.b16 %v392
    %v921 = vunpack.c.h.b16 %v392
    %v922 = vunpack.c.l.b16 %v393
    %v923 = vunpack.c.h.b16 %v393
    %v924 = vunpack.c.l.b16 %v394
    %v925 = vunpack.c.h.b16 %v394
    %v926 = vunpack.c.l.b16 %v395
    %v927 = vunpack.c.h.b16 %v395
    %v928 = vunpack.c.l.b16 %v396
    %v929 = vunpack.c.h.b16 %v396
    %v930 = vunpack.c.l.b16 %v397
    %v931 = vunpack.c.h.b16 %v397
    %v932 = vunpack.c.l.b16 %v398
    %v933 = vunpack.c.h.b16 %v398
    %v934 = vunpack.c.l.b16 %v399
    %v935 = vunpack.c.h.b16 %v399
    %v936 = vunpack.c.l.b16 %v400
    %v937 = vunpack.c.h.b16 %v400
    %v938 = vunpack.c.l.b16 %v401
    %v939 = vunpack.c.h.b16 %v401
    %v940 = vunpack.c.l.b16 %v402
    %v941 = vunpack.c.h.b16 %v402
    %v942 = vunpack.c.l.b16 %v403
    %v943 = vunpack.c.h.b16 %v403
    %v944 = vunpack.c.l.b16 %v404
    %v945 = vunpack.c.h.b16 %v404
    %v946 = vunpack.c.l.b16 %v405
    %v947 = vunpack.c.h.b16 %v405
    %v948 = vunpack.c.l.b16 %v406
    %v949 = vunpack.c.h.b16 %v406
    %v950 = vunpack.c.l.b16 %v407
    %v951 = vunpack.c.h.b16 %v407
    %v952 = vunpack.c.l.b16 %v408
    %v953 = vunpack.c.h.b16 %v408
    %v954 = vunpack.c.l.b16 %v409
    %v955 = vunpack.c.h.b16 %v409
    %v956 = vunpack.c.l.b16 %v410
    %v957 = vunpack.c.h.b16 %v410
    %v958 = vunpack.c.l.b16 %v411
    %v959 = vunpack.c.h.b16 %v411
    %v960 = vunpack.c.l.b16 %v412
    %v961 = vunpack.c.h.b16 %v412
    %v962 = vunpack.c.l.b16 %v413
    %v963 = vunpack.c.h.b16 %v413
    %v964 = vunpack.c.l.b16 %v414
    %v965 = vunpack.c.h.b16 %v414
    %v966 = vunpack.c.l.b16 %v415
    %v967 = vunpack.c.h.b16 %v415
    %v968 = vunpack.c.l.b16 %v416
    %v969 = vunpack.c.h.b16 %v416
    %v970 = vunpack.c.l.b16 %v417
    %v971 = vunpack.c.h.b16 %v417
    %v972 = vunpack.c.l.b16 %v418
    %v973 = vunpack.c.h.b16 %v418
    %v974 = vunpack.c.l.b16 %v419
    %v975 = vunpack.c.h.b16 %v419
    %v976 = vunpack.c.l.b16 %v420
    %v977 = vunpack.c.h.b16 %v420
    %v978 = vunpack.c.l.b16 %v421
    %v979 = vunpack.c.h.b16 %v421
    %v980 = vunpack.c.l.b16 %v422
    %v981 = vunpack.c.h.b16 %v422
    %v982 = vunpack.c.l.b16 %v423
    %v983 = vunpack.c.h.b16 %v423
    %v984 = vunpack.c.l.b16 %v424
    %v985 = vunpack.c.h.b16 %v424
    %v986 = vunpack.c.l.b16 %v425
    %v987 = vunpack.c.h.b16 %v425
    %v988 = vunpack.c.l.b16 %v426
    %v989 = vunpack.c.h.b16 %v426
    %v990 = vunpack.c.l.b16 %v427
    %v991 = vunpack.c.h.b16 %v427
    %v992 = vunpack.c.l.b16 %v428
    %v993 = vunpack.c.h.b16 %v428
    %v994 = vunpack.c.l.b16 %v429
    %v995 = vunpack.c.h.b16 %v429
    %v996 = vunpack.c.l.b16 %v430
    %v997 = vunpack.c.h.b16 %v430
    %v998 = vunpack.c.l.b16 %v431
    %v999 = vunpack.c.h.b16 %v431
    %v1000 = vunpack.c.l.b16 %v432
    %v1001 = vunpack.c.h.b16 %v432
    %v1002 = vunpack.c.l.b16 %v433
    %v1003 = vunpack.c.h.b16 %v433
    %v1004 = vunpack.c.l.b16 %v434
    %v1005 = vunpack.c.h.b16 %v434
    %v1006 = vunpack.c.l.b16 %v435
    %v1007 = vunpack.c.h.b16 %v435
    %v1008 = vunpack.c.l.b16 %v436
    %v1009 = vunpack.c.h.b16 %v436
    %v1010 = vunpack.c.l.b16 %v437
    %v1011 = vunpack.c.h.b16 %v437
    %v1012 = vunpack.c.l.b16 %v438
    %v1013 = vunpack.c.h.b16 %v438
    %v1014 = vunpack.c.l.b16 %v439
    %v1015 = vunpack.c.h.b16 %v439
    %v1016 = vunpack.c.l.b16 %v440
    %v1017 = vunpack.c.h.b16 %v440
    %v1018 = vunpack.c.l.b16 %v441
    %v1019 = vunpack.c.h.b16 %v441
    %v1020 = vunpack.c.l.b16 %v442
    %v1021 = vunpack.c.h.b16 %v442
    %v1022 = vunpack.c.l.b16 %v443
    %v1023 = vunpack.c.h.b16 %v443
    %v1024 = vunpack.c.l.b16 %v444
    %v1025 = vunpack.c.h.b16 %v444
    %v1026 = vunpack.c.l.b16 %v445
    %v1027 = vunpack.c.h.b16 %v445
    %v1028 = vunpack.c.l.b16 %v446
    %v1029 = vunpack.c.h.b16 %v446
    %v1030 = vunpack.c.l.b16 %v447
    %v1031 = vunpack.c.h.b16 %v447
    %v1032 = vunpack.c.l.b16 %v448
    %v1033 = vunpack.c.h.b16 %v448
    %v1034 = vunpack.c.l.b16 %v449
    %v1035 = vunpack.c.h.b16 %v449
    %v1036 = vunpack.c.l.b16 %v450
    %v1037 = vunpack.c.h.b16 %v450
    %v1038 = vunpack.c.l.b16 %v451
    %v1039 = vunpack.c.h.b16 %v451
    %v1040 = vunpack.c.l.b16 %v452
    %v1041 = vunpack.c.h.b16 %v452
    %v1042 = vunpack.c.l.b16 %v453
    %v1043 = vunpack.c.h.b16 %v453
    %v1044 = vunpack.c.l.b16 %v454
    %v1045 = vunpack.c.h.b16 %v454
    %v1046 = vunpack.c.l.b16 %v455
    %v1047 = vunpack.c.h.b16 %v455
    %v1048 = vunpack.c.l.b16 %v456
    %v1049 = vunpack.c.h.b16 %v456
    %v1050 = vunpack.c.l.b16 %v457
    %v1051 = vunpack.c.h.b16 %v457
    %v1052 = vunpack.c.l.b16 %v458
    %v1053 = vunpack.c.h.b16 %v458
    %v1054 = vunpack.c.l.b16 %v459
    %v1055 = vunpack.c.h.b16 %v459
    %v1056 = vunpack.c.l.b16 %v460
    %v1057 = vunpack.c.h.b16 %v460
    %v1058 = vunpack.c.l.b16 %v461
    %v1059 = vunpack.c.h.b16 %v461
    %v1060 = vunpack.c.l.b16 %v462
    %v1061 = vunpack.c.h.b16 %v462
    %v1062 = vunpack.c.l.b16 %v463
    %v1063 = vunpack.c.h.b16 %v463
    %v1064 = vunpack.c.l.b16 %v464
    %v1065 = vunpack.c.h.b16 %v464
    %v1066 = vunpack.c.l.b16 %v465
    %v1067 = vunpack.c.h.b16 %v465
    %v1068 = vunpack.c.l.b16 %v466
    %v1069 = vunpack.c.h.b16 %v466
    %v1070 = vunpack.c.l.b16 %v467
    %v1071 = vunpack.c.h.b16 %v467
    %v1072 = vunpack.c.l.b16 %v468
    %v1073 = vunpack.c.h.b16 %v468
    %v1074 = vunpack.c.l.b16 %v469
    %v1075 = vunpack.c.h.b16 %v469
    %v1076 = vunpack.c.l.b16 %v470
    %v1077 = vunpack.c.h.b16 %v470
    %v1078 = vunpack.c.l.b16 %v471
    %v1079 = vunpack.c.h.b16 %v471
    %v1080 = vunpack.c.l.b16 %v472
    %v1081 = vunpack.c.h.b16 %v472
    %v1082 = vunpack.c.l.b16 %v473
    %v1083 = vunpack.c.h.b16 %v473
    %v1084 = vpack.c.b16 %v696, %v692
    %v1085 = vpack.c.b16 %v697, %v693
    %v1086 = vpack.c.b16 %v698, %v694
    %v1087 = vpack.c.b16 %v699, %v695
    %v1088 = vpack.c.b16 %v704, %v700
    %v1089 = vpack.c.b16 %v705, %v701
    %v1090 = vpack.c.b16 %v706, %v702
    %v1091 = vpack.c.b16 %v707, %v703
    %v1092 = vpack.c.b16 %v712, %v708
    %v1093 = vpack.c.b16 %v713, %v709
    %v1094 = vpack.c.b16 %v714, %v710
    %v1095 = vpack.c.b16 %v715, %v711
    %v1096 = vpack.c.b16 %v720, %v716
    %v1097 = vpack.c.b16 %v721, %v717
    %v1098 = vpack.c.b16 %v722, %v718
    %v1099 = vpack.c.b16 %v723, %v719
    %v1100 = vpack.c.b16 %v728, %v724
    %v1101 = vpack.c.b16 %v729, %v725
    %v1102 = vpack.c.b16 %v730, %v726
    %v1103 = vpack.c.b16 %v731, %v727
    %v1104 = vpack.c.b16 %v736, %v732
    %v1105 = vpack.c.b16 %v737, %v733
    %v1106 = vpack.c.b16 %v738, %v734
    %v1107 = vpack.c.b16 %v739, %v735
    %v1108 = vpack.c.b16 %v744, %v740
    %v1109 = vpack.c.b16 %v745, %v741
    %v1110 = vpack.c.b16 %v746, %v742
    %v1111 = vpack.c.b16 %v747, %v743
    %v1112 = vpack.c.b16 %v752, %v748
    %v1113 = vpack.c.b16 %v753, %v749
    %v1114 = vpack.c.b16 %v754, %v750
    %v1115 = vpack.c.b16 %v755, %v751
    %v1116 = vpack.c.b16 %v760, %v756
    %v1117 = vpack.c.b16 %v761, %v757
    %v1118 = vpack.c.b16 %v762, %v758
    %v1119 = vpack.c.b16 %v763, %v759
    %v1120 = vpack.c.b16 %v768, %v764
    %v1121 = vpack.c.b16 %v769, %v765
    %v1122 = vpack.c.b16 %v770, %v766
    %v1123 = vpack.c.b16 %v771, %v767
    %v1124 = vpack.c.b16 %v776, %v772
    %v1125 = vpack.c.b16 %v777, %v773
    %v1126 = vpack.c.b16 %v778, %v774
    %v1127 = vpack.c.b16 %v779, %v775
    %v1128 = vpack.c.b16 %v784, %v780
    %v1129 = vpack.c.b16 %v785, %v781
    %v1130 = vpack.c.b16 %v786, %v782
    %v1131 = vpack.c.b16 %v787, %v783
    %v1132 = vpack.c.b16 %v792, %v788
    %v1133 = vpack.c.b16 %v793, %v789
    %v1134 = vpack.c.b16 %v794, %v790
    %v1135 = vpack.c.b16 %v795, %v791
    %v1136 = vpack.c.b16 %v800, %v796
    %v1137 = vpack.c.b16 %v801, %v797
    %v1138 = vpack.c.b16 %v802, %v798
    %v1139 = vpack.c.b16 %v803, %v799
    %v1140 = vpack.c.b16 %v808, %v804
    %v1141 = vpack.c.b16 %v809, %v805
    %v1142 = vpack.c.b16 %v810, %v806
    %v1143 = vpack.c.b16 %v811, %v807
    %v1144 = vpack.c.b16 %v816, %v812
    %v1145 = vpack.c.b16 %v817, %v813
    %v1146 = vpack.c.b16 %v818, %v814
    %v1147 = vpack.c.b16 %v819, %v815
    %v1148 = vpack.c.b16 %v824, %v820
    %v1149 = vpack.c.b16 %v825, %v821
    %v1150 = vpack.c.b16 %v826, %v822
    %v1151 = vpack.c.b16 %v827, %v823
    %v1152 = vpack.c.b16 %v832, %v828
    %v1153 = vpack.c.b16 %v833, %v829
    %v1154 = vpack.c.b16 %v834, %v830
    %v1155 = vpack.c.b16 %v835, %v831
    %v1156 = vpack.c.b16 %v840, %v836
    %v1157 = vpack.c.b16 %v841, %v837
    %v1158 = vpack.c.b16 %v842, %v838
    %v1159 = vpack.c.b16 %v843, %v839
    %v1160 = vpack.c.b16 %v848, %v844
    %v1161 = vpack.c.b16 %v849, %v845
    %v1162 = vpack.c.b16 %v850, %v846
    %v1163 = vpack.c.b16 %v851, %v847
    %v1164 = vpack.c.b16 %v856, %v852
    %v1165 = vpack.c.b16 %v857, %v853
    %v1166 = vpack.c.b16 %v858, %v854
    %v1167 = vpack.c.b16 %v859, %v855
    %v1168 = vpack.c.b16 %v864, %v860
    %v1169 = vpack.c.b16 %v865, %v861
    %v1170 = vpack.c.b16 %v866, %v862
    %v1171 = vpack.c.b16 %v867, %v863
    %v1172 = vpack.c.b16 %v872, %v868
    %v1173 = vpack.c.b16 %v873, %v869
    %v1174 = vpack.c.b16 %v874, %v870
    %v1175 = vpack.c.b16 %v875, %v871
    %v1176 = vpack.c.b16 %v880, %v876
    %v1177 = vpack.c.b16 %v881, %v877
    %v1178 = vpack.c.b16 %v882, %v878
    %v1179 = vpack.c.b16 %v883, %v879
    %v1180 = vpack.c.b16 %v888, %v884
    %v1181 = vpack.c.b16 %v889, %v885
    %v1182 = vpack.c.b16 %v890, %v886
    %v1183 = vpack.c.b16 %v891, %v887
    %v1184 = vpack.c.b16 %v896, %v892
    %v1185 = vpack.c.b16 %v897, %v893
    %v1186 = vpack.c.b16 %v898, %v894
    %v1187 = vpack.c.b16 %v899, %v895
    %v1188 = vpack.c.b16 %v904, %v900
    %v1189 = vpack.c.b16 %v905, %v901
    %v1190 = vpack.c.b16 %v906, %v902
    %v1191 = vpack.c.b16 %v907, %v903
    %v1192 = vpack.c.b16 %v912, %v908
    %v1193 = vpack.c.b16 %v913, %v909
    %v1194 = vpack.c.b16 %v914, %v910
    %v1195 = vpack.c.b16 %v915, %v911
    %v1196 = vpack.c.b16 %v920, %v916
    %v1197 = vpack.c.b16 %v921, %v917
    %v1198 = vpack.c.b16 %v922, %v918
    %v1199 = vpack.c.b16 %v923, %v919
    %v1200 = vpack.c.b16 %v928, %v924
    %v1201 = vpack.c.b16 %v929, %v925
    %v1202 = vpack.c.b16 %v930, %v926
    %v1203 = vpack.c.b16 %v931, %v927
    %v1204 = vpack.c.b16 %v936, %v932
    %v1205 = vpack.c.b16 %v937, %v933
    %v1206 = vpack.c.b16 %v938, %v934
    %v1207 = vpack.c.b16 %v939, %v935
    %v1208 = vpack.c.b16 %v944, %v940
    %v1209 = vpack.c.b16 %v945, %v941
    %v1210 = vpack.c.b16 %v946, %v942
    %v1211 = vpack.c.b16 %v947, %v943
    %v1212 = vpack.c.b16 %v952, %v948
    %v1213 = vpack.c.b16 %v953, %v949
    %v1214 = vpack.c.b16 %v954, %v950
    %v1215 = vpack.c.b16 %v955, %v951
    %v1216 = vpack.c.b16 %v960, %v956
    %v1217 = vpack.c.b16 %v961, %v957
    %v1218 = vpack.c.b16 %v962, %v958
    %v1219 = vpack.c.b16 %v963, %v959
    %v1220 = vpack.c.b16 %v968, %v964
    %v1221 = vpack.c.b16 %v969, %v965
    %v1222 = vpack.c.b16 %v970, %v966
    %v1223 = vpack.c.b16 %v971, %v967
    %v1224 = vpack.c.b16 %v976, %v972
    %v1225 = vpack.c.b16 %v977, %v973
    %v1226 = vpack.c.b16 %v978, %v974
    %v1227 = vpack.c.b16 %v979, %v975
    %v1228 = vpack.c.b16 %v984, %v980
    %v1229 = vpack.c.b16 %v985, %v981
    %v1230 = vpack.c.b16 %v986, %v982
    %v1231 = vpack.c.b16 %v987, %v983
    %v1232 = vpack.c.b16 %v992, %v988
    %v1233 = vpack.c.b16 %v993, %v989
    %v1234 = vpack.c.b16 %v994, %v990
    %v1235 = vpack.c.b16 %v995, %v991
    %v1236 = vpack.c.b16 %v1000, %v996
    %v1237 = vpack.c.b16 %v1001, %v997
    %v1238 = vpack.c.b16 %v1002, %v998
    %v1239 = vpack.c.b16 %v1003, %v999
    %v1240 = vpack.c.b16 %v1008, %v1004
    %v1241 = vpack.c.b16 %v1009, %v1005
    %v1242 = vpack.c.b16 %v1010, %v1006
    %v1243 = vpack.c.b16 %v1011, %v1007
    %v1244 = vpack.c.b16 %v1016, %v1012
    %v1245 = vpack.c.b16 %v1017, %v1013
    %v1246 = vpack.c.b16 %v1018, %v1014
    %v1247 = vpack.c.b16 %v1019, %v1015
    %v1248 = vpack.c.b16 %v1024, %v1020
    %v1249 = vpack.c.b16 %v1025, %v1021
    %v1250 = vpack.c.b16 %v1026, %v1022
    %v1251 = vpack.c.b16 %v1027, %v1023
    %v1252 = vpack.c.b16 %v1032, %v1028
    %v1253 = vpack.c.b16 %v1033, %v1029
    %v1254 = vpack.c.b16 %v1034, %v1030
    %v1255 = vpack.c.b16 %v1035, %v1031
    %v1256 = vpack.c.b16 %v1040, %v1036
    %v1257 = vpack.c.b16 %v1041, %v1037
    %v1258 = vpack.c.b16 %v1042, %v1038
    %v1259 = vpack.c.b16 %v1043, %v1039
    %v1260 = vpack.c.b16 %v1048, %v1044
    %v1261 = vpack.c.b16 %v1049, %v1045
    %v1262 = vpack.c.b16 %v1050, %v1046
    %v1263 = vpack.c.b16 %v1051, %v1047
    %v1264 = vpack.c.b16 %v1056, %v1052
    %v1265 = vpack.c.b16 %v1057, %v1053
    %v1266 = vpack.c.b16 %v1058, %v1054
    %v1267 = vpack.c.b16 %v1059, %v1055
    %v1268 = vpack.c.b16 %v1064, %v1060
    %v1269 = vpack.c.b16 %v1065, %v1061
    %v1270 = vpack.c.b16 %v1066, %v1062
    %v1271 = vpack.c.b16 %v1067, %v1063
    %v1272 = vpack.c.b16 %v1072, %v1068
    %v1273 = vpack.c.b16 %v1073, %v1069
    %v1274 = vpack.c.b16 %v1074, %v1070
    %v1275 = vpack.c.b16 %v1075, %v1071
    %v1276 = vpack.c.b16 %v1080, %v1076
    %v1277 = vpack.c.b16 %v1081, %v1077
    %v1278 = vpack.c.b16 %v1082, %v1078
    %v1279 = vpack.c.b16 %v1083, %v1079
    %vm1476 = vcmask 130048
    %v1478 = vsel %vm1476, %v277, 0
    %1480 = vmatprep.subr.bf16.mxu0 %v1085
    %1481 = vmatpush1.bf16.msra.mxu0 %v1084
    %1482 = vmatprep.subr.bf16.mxu0 %v1089
    %1483 = vmatpush1.bf16.msra.mxu0 %v1088
    %1484 = vmatprep.subr.bf16.mxu0 %v1093
    %1485 = vmatpush1.bf16.msra.mxu0 %v1092
    %1486 = vmatprep.subr.bf16.mxu0 %v1097
    %1487 = vmatpush1.bf16.msra.mxu0 %v1096
    %1488 = vmatprep.subr.bf16.mxu0 %v1101
    %1489 = vmatpush1.bf16.msra.mxu0 %v1100
    %1490 = vmatprep.subr.bf16.mxu0 %v1105
    %1491 = vmatpush1.bf16.msra.mxu0 %v1104
    %1492 = vmatprep.subr.bf16.mxu0 %v1109
    %1493 = vmatpush1.bf16.msra.mxu0 %v1108
    %1494 = vmatprep.subr.bf16.mxu0 %v1113
    %1495 = vmatpush1.bf16.msra.mxu0 %v1112
    %1496 = vmatprep.subr.bf16.mxu0 %v1117
    %1497 = vmatpush1.bf16.msra.mxu0 %v1116
    %1498 = vmatprep.subr.bf16.mxu0 %v1121
    %1499 = vmatpush1.bf16.msra.mxu0 %v1120
    %1500 = vmatprep.subr.bf16.mxu0 %v1125
    %1501 = vmatpush1.bf16.msra.mxu0 %v1124
    %1502 = vmatprep.subr.bf16.mxu0 %v1129
    %1503 = vmatpush1.bf16.msra.mxu0 %v1128
    %1504 = vmatprep.subr.bf16.mxu0 %v1133
    %1505 = vmatpush1.bf16.msra.mxu0 %v1132
    %1506 = vmatprep.subr.bf16.mxu0 %v1137
    %1507 = vmatpush1.bf16.msra.mxu0 %v1136
    %1508 = vmatprep.subr.bf16.mxu0 %v1141
    %1509 = vmatpush1.bf16.msra.mxu0 %v1140
    %1510 = vmatprep.subr.bf16.mxu0 %v1145
    %1511 = vmatpush1.bf16.msra.mxu0 %v1144
    %1512 = vmatprep.mubr.bf16.mxu0 %v272
    %1513 = vmatmul.mubr.bf16.gmra.mrb[0].mxu0 %v271
    %v1514 = vpop.f32.mrb[0].mxu0
    %v1515 = vadd.f32 %v479, %v1514
    %v1516 = vpop.f32.mrb[0].mxu0
    %v1517 = vadd.f32 %v483, %v1516
    %v1518 = vpop.f32.mrb[0].mxu0
    %v1519 = vadd.f32 %v479, %v1518
    %v1520 = vpop.f32.mrb[0].mxu0
    %v1521 = vadd.f32 %v483, %v1520
    %1522 = vdwg.mxu0
    %1523 = vmatprep.subr.bf16.mxu0 %v1149
    %1524 = vmatpush1.bf16.msra.mxu0 %v1148
    %1525 = vmatprep.subr.bf16.mxu0 %v1153
    %1526 = vmatpush1.bf16.msra.mxu0 %v1152
    %1527 = vmatprep.subr.bf16.mxu0 %v1157
    %1528 = vmatpush1.bf16.msra.mxu0 %v1156
    %1529 = vmatprep.subr.bf16.mxu0 %v1161
    %1530 = vmatpush1.bf16.msra.mxu0 %v1160
    %1531 = vmatprep.subr.bf16.mxu0 %v1165
    %1532 = vmatpush1.bf16.msra.mxu0 %v1164
    %1533 = vmatprep.subr.bf16.mxu0 %v1169
    %1534 = vmatpush1.bf16.msra.mxu0 %v1168
    %1535 = vmatprep.subr.bf16.mxu0 %v1173
    %1536 = vmatpush1.bf16.msra.mxu0 %v1172
    %1537 = vmatprep.subr.bf16.mxu0 %v1177
    %1538 = vmatpush1.bf16.msra.mxu0 %v1176
    %1539 = vmatprep.subr.bf16.mxu0 %v1181
    %1540 = vmatpush1.bf16.msra.mxu0 %v1180
    %1541 = vmatprep.subr.bf16.mxu0 %v1185
    %1542 = vmatpush1.bf16.msra.mxu0 %v1184
    %1543 = vmatprep.subr.bf16.mxu0 %v1189
    %1544 = vmatpush1.bf16.msra.mxu0 %v1188
    %1545 = vmatprep.subr.bf16.mxu0 %v1193
    %1546 = vmatpush1.bf16.msra.mxu0 %v1192
    %1547 = vmatprep.subr.bf16.mxu0 %v1197
    %1548 = vmatpush1.bf16.msra.mxu0 %v1196
    %1549 = vmatprep.subr.bf16.mxu0 %v1201
    %1550 = vmatpush1.bf16.msra.mxu0 %v1200
    %1551 = vmatprep.subr.bf16.mxu0 %v1205
    %1552 = vmatpush1.bf16.msra.mxu0 %v1204
    %1553 = vmatprep.subr.bf16.mxu0 %v1209
    %1554 = vmatpush1.bf16.msra.mxu0 %v1208
    %1555 = vmatprep.mubr.bf16.mxu0 %v274
    %1556 = vmatmul.mubr.bf16.gmra.mrb[0].mxu0 %v273
    %v1557 = vpop.f32.mrb[0].mxu0
    %v1558 = vadd.f32 %v1515, %v1557
    %v1559 = vpop.f32.mrb[0].mxu0
    %v1560 = vadd.f32 %v1517, %v1559
    %v1561 = vpop.f32.mrb[0].mxu0
    %v1562 = vadd.f32 %v1519, %v1561
    %v1563 = vpop.f32.mrb[0].mxu0
    %v1564 = vadd.f32 %v1521, %v1563
    %1565 = vdwg.mxu0
    %1566 = vmatprep.subr.bf16.mxu0 %v1213
    %1567 = vmatpush1.bf16.msra.mxu0 %v1212
    %1568 = vmatprep.subr.bf16.mxu0 %v1217
    %1569 = vmatpush1.bf16.msra.mxu0 %v1216
    %1570 = vmatprep.subr.bf16.mxu0 %v1221
    %1571 = vmatpush1.bf16.msra.mxu0 %v1220
    %1572 = vmatprep.subr.bf16.mxu0 %v1225
    %1573 = vmatpush1.bf16.msra.mxu0 %v1224
    %1574 = vmatprep.subr.bf16.mxu0 %v1229
    %1575 = vmatpush1.bf16.msra.mxu0 %v1228
    %1576 = vmatprep.subr.bf16.mxu0 %v1233
    %1577 = vmatpush1.bf16.msra.mxu0 %v1232
    %1578 = vmatprep.subr.bf16.mxu0 %v1237
    %1579 = vmatpush1.bf16.msra.mxu0 %v1236
    %1580 = vmatprep.subr.bf16.mxu0 %v1241
    %1581 = vmatpush1.bf16.msra.mxu0 %v1240
    %1582 = vmatprep.subr.bf16.mxu0 %v1245
    %1583 = vmatpush1.bf16.msra.mxu0 %v1244
    %1584 = vmatprep.subr.bf16.mxu0 %v1249
    %1585 = vmatpush1.bf16.msra.mxu0 %v1248
    %1586 = vmatprep.subr.bf16.mxu0 %v1253
    %1587 = vmatpush1.bf16.msra.mxu0 %v1252
    %1588 = vmatprep.subr.bf16.mxu0 %v1257
    %1589 = vmatpush1.bf16.msra.mxu0 %v1256
    %1590 = vmatprep.subr.bf16.mxu0 %v1261
    %1591 = vmatpush1.bf16.msra.mxu0 %v1260
    %1592 = vmatprep.subr.bf16.mxu0 %v1265
    %1593 = vmatpush1.bf16.msra.mxu0 %v1264
    %1594 = vmatprep.subr.bf16.mxu0 %v1269
    %1595 = vmatpush1.bf16.msra.mxu0 %v1268
    %1596 = vmatprep.subr.bf16.mxu0 %v1273
    %1597 = vmatpush1.bf16.msra.mxu0 %v1272
    %1598 = vmatprep.mubr.bf16.mxu0 %v276
    %1599 = vmatmul.mubr.bf16.gmra.mrb[0].mxu0 %v275
    %v1600 = vpop.f32.mrb[0].mxu0
    %v1601 = vadd.f32 %v1558, %v1600
    %v1602 = vpop.f32.mrb[0].mxu0
    %v1603 = vadd.f32 %v1560, %v1602
    %v1604 = vpop.f32.mrb[0].mxu0
    %v1605 = vadd.f32 %v1562, %v1604
    %v1606 = vpop.f32.mrb[0].mxu0
    %v1607 = vadd.f32 %v1564, %v1606
    %1608 = vdwg.mxu0
    %1609 = vmatprep.subr.bf16.mxu0 %v1277
    %1610 = vmatpush1.bf16.msra.mxu0 %v1276
    %1611 = vmatprep.subr.bf16.mxu0 0
    %1612 = vmatpush1.bf16.msra.mxu0 0
    %1613 = vmatprep.subr.bf16.mxu0 0
    %1614 = vmatpush1.bf16.msra.mxu0 0
    %1615 = vmatprep.subr.bf16.mxu0 0
    %1616 = vmatpush1.bf16.msra.mxu0 0
    %1617 = vmatprep.subr.bf16.mxu0 0
    %1618 = vmatpush1.bf16.msra.mxu0 0
    %1619 = vmatprep.subr.bf16.mxu0 0
    %1620 = vmatpush1.bf16.msra.mxu0 0
    %1621 = vmatprep.subr.bf16.mxu0 0
    %1622 = vmatpush1.bf16.msra.mxu0 0
    %1623 = vmatprep.subr.bf16.mxu0 0
    %1624 = vmatpush1.bf16.msra.mxu0 0
    %1625 = vmatprep.subr.bf16.mxu0 0
    %1626 = vmatpush1.bf16.msra.mxu0 0
    %1627 = vmatprep.subr.bf16.mxu0 0
    %1628 = vmatpush1.bf16.msra.mxu0 0
    %1629 = vmatprep.subr.bf16.mxu0 0
    %1630 = vmatpush1.bf16.msra.mxu0 0
    %1631 = vmatprep.subr.bf16.mxu0 0
    %1632 = vmatpush1.bf16.msra.mxu0 0
    %1633 = vmatprep.subr.bf16.mxu0 0
    %1634 = vmatpush1.bf16.msra.mxu0 0
    %1635 = vmatprep.subr.bf16.mxu0 0
    %1636 = vmatpush1.bf16.msra.mxu0 0
    %1637 = vmatprep.subr.bf16.mxu0 0
    %1638 = vmatpush1.bf16.msra.mxu0 0
    %1639 = vmatprep.subr.bf16.mxu0 0
    %1640 = vmatpush1.bf16.msra.mxu0 0
    %1641 = vmatprep.mubr.bf16.mxu0 0
    %1642 = vmatmul.mubr.bf16.gmra.mrb[0].mxu0 %v1478
    %v1643 = vpop.f32.mrb[0].mxu0
    %v1644 = vadd.f32 %v1601, %v1643
    %v1645 = vpop.f32.mrb[0].mxu0
    %v1646 = vadd.f32 %v1603, %v1645
    %v1647 = vpop.f32.mrb[0].mxu0
    %v1648 = vadd.f32 %v1605, %v1647
    %v1649 = vpop.f32.mrb[0].mxu0
    %v1650 = vadd.f32 %v1607, %v1649
    %1651 = vdwg.mxu0
    %1652 = vmatprep.subr.bf16.mxu0 %v1087
    %1653 = vmatpush1.bf16.msra.mxu0 %v1086
    %1654 = vmatprep.subr.bf16.mxu0 %v1091
    %1655 = vmatpush1.bf16.msra.mxu0 %v1090
    %1656 = vmatprep.subr.bf16.mxu0 %v1095
    %1657 = vmatpush1.bf16.msra.mxu0 %v1094
    %1658 = vmatprep.subr.bf16.mxu0 %v1099
    %1659 = vmatpush1.bf16.msra.mxu0 %v1098
    %1660 = vmatprep.subr.bf16.mxu0 %v1103
    %1661 = vmatpush1.bf16.msra.mxu0 %v1102
    %1662 = vmatprep.subr.bf16.mxu0 %v1107
    %1663 = vmatpush1.bf16.msra.mxu0 %v1106
    %1664 = vmatprep.subr.bf16.mxu0 %v1111
    %1665 = vmatpush1.bf16.msra.mxu0 %v1110
    %1666 = vmatprep.subr.bf16.mxu0 %v1115
    %1667 = vmatpush1.bf16.msra.mxu0 %v1114
    %1668 = vmatprep.subr.bf16.mxu0 %v1119
    %1669 = vmatpush1.bf16.msra.mxu0 %v1118
    %1670 = vmatprep.subr.bf16.mxu0 %v1123
    %1671 = vmatpush1.bf16.msra.mxu0 %v1122
    %1672 = vmatprep.subr.bf16.mxu0 %v1127
    %1673 = vmatpush1.bf16.msra.mxu0 %v1126
    %1674 = vmatprep.subr.bf16.mxu0 %v1131
    %1675 = vmatpush1.bf16.msra.mxu0 %v1130
    %1676 = vmatprep.subr.bf16.mxu0 %v1135
    %1677 = vmatpush1.bf16.msra.mxu0 %v1134
    %1678 = vmatprep.subr.bf16.mxu0 %v1139
    %1679 = vmatpush1.bf16.msra.mxu0 %v1138
    %1680 = vmatprep.subr.bf16.mxu0 %v1143
    %1681 = vmatpush1.bf16.msra.mxu0 %v1142
    %1682 = vmatprep.subr.bf16.mxu0 %v1147
    %1683 = vmatpush1.bf16.msra.mxu0 %v1146
    %1684 = vmatprep.mubr.bf16.mxu0 %v272
    %1685 = vmatmul.mubr.bf16.gmra.mrb[0].mxu0 %v271
    %v1686 = vpop.f32.mrb[0].mxu0
    %v1687 = vadd.f32 %v487, %v1686
    %v1688 = vpop.f32.mrb[0].mxu0
    %v1689 = vadd.f32 %v491, %v1688
    %v1690 = vpop.f32.mrb[0].mxu0
    %v1691 = vadd.f32 %v487, %v1690
    %v1692 = vpop.f32.mrb[0].mxu0
    %v1693 = vadd.f32 %v491, %v1692
    %1694 = vdwg.mxu0
    %1695 = vmatprep.subr.bf16.mxu0 %v1151
    %1696 = vmatpush1.bf16.msra.mxu0 %v1150
    %1697 = vmatprep.subr.bf16.mxu0 %v1155
    %1698 = vmatpush1.bf16.msra.mxu0 %v1154
    %1699 = vmatprep.subr.bf16.mxu0 %v1159
    %1700 = vmatpush1.bf16.msra.mxu0 %v1158
    %1701 = vmatprep.subr.bf16.mxu0 %v1163
    %1702 = vmatpush1.bf16.msra.mxu0 %v1162
    %1703 = vmatprep.subr.bf16.mxu0 %v1167
    %1704 = vmatpush1.bf16.msra.mxu0 %v1166
    %1705 = vmatprep.subr.bf16.mxu0 %v1171
    %1706 = vmatpush1.bf16.msra.mxu0 %v1170
    %1707 = vmatprep.subr.bf16.mxu0 %v1175
    %1708 = vmatpush1.bf16.msra.mxu0 %v1174
    %1709 = vmatprep.subr.bf16.mxu0 %v1179
    %1710 = vmatpush1.bf16.msra.mxu0 %v1178
    %1711 = vmatprep.subr.bf16.mxu0 %v1183
    %1712 = vmatpush1.bf16.msra.mxu0 %v1182
    %1713 = vmatprep.subr.bf16.mxu0 %v1187
    %1714 = vmatpush1.bf16.msra.mxu0 %v1186
    %1715 = vmatprep.subr.bf16.mxu0 %v1191
    %1716 = vmatpush1.bf16.msra.mxu0 %v1190
    %1717 = vmatprep.subr.bf16.mxu0 %v1195
    %1718 = vmatpush1.bf16.msra.mxu0 %v1194
    %1719 = vmatprep.subr.bf16.mxu0 %v1199
    %1720 = vmatpush1.bf16.msra.mxu0 %v1198
    %1721 = vmatprep.subr.bf16.mxu0 %v1203
    %1722 = vmatpush1.bf16.msra.mxu0 %v1202
    %1723 = vmatprep.subr.bf16.mxu0 %v1207
    %1724 = vmatpush1.bf16.msra.mxu0 %v1206
    %1725 = vmatprep.subr.bf16.mxu0 %v1211
    %1726 = vmatpush1.bf16.msra.mxu0 %v1210
    %1727 = vmatprep.mubr.bf16.mxu0 %v274
    %1728 = vmatmul.mubr.bf16.gmra.mrb[0].mxu0 %v273
    %v1729 = vpop.f32.mrb[0].mxu0
    %v1730 = vadd.f32 %v1687, %v1729
    %v1731 = vpop.f32.mrb[0].mxu0
    %v1732 = vadd.f32 %v1689, %v1731
    %v1733 = vpop.f32.mrb[0].mxu0
    %v1734 = vadd.f32 %v1691, %v1733
    %v1735 = vpop.f32.mrb[0].mxu0
    %v1736 = vadd.f32 %v1693, %v1735
    %1737 = vdwg.mxu0
    %1738 = vmatprep.subr.bf16.mxu0 %v1215
    %1739 = vmatpush1.bf16.msra.mxu0 %v1214
    %1740 = vmatprep.subr.bf16.mxu0 %v1219
    %1741 = vmatpush1.bf16.msra.mxu0 %v1218
    %1742 = vmatprep.subr.bf16.mxu0 %v1223
    %1743 = vmatpush1.bf16.msra.mxu0 %v1222
    %1744 = vmatprep.subr.bf16.mxu0 %v1227
    %1745 = vmatpush1.bf16.msra.mxu0 %v1226
    %1746 = vmatprep.subr.bf16.mxu0 %v1231
    %1747 = vmatpush1.bf16.msra.mxu0 %v1230
    %1748 = vmatprep.subr.bf16.mxu0 %v1235
    %1749 = vmatpush1.bf16.msra.mxu0 %v1234
    %1750 = vmatprep.subr.bf16.mxu0 %v1239
    %1751 = vmatpush1.bf16.msra.mxu0 %v1238
    %1752 = vmatprep.subr.bf16.mxu0 %v1243
    %1753 = vmatpush1.bf16.msra.mxu0 %v1242
    %1754 = vmatprep.subr.bf16.mxu0 %v1247
    %1755 = vmatpush1.bf16.msra.mxu0 %v1246
    %1756 = vmatprep.subr.bf16.mxu0 %v1251
    %1757 = vmatpush1.bf16.msra.mxu0 %v1250
    %1758 = vmatprep.subr.bf16.mxu0 %v1255
    %1759 = vmatpush1.bf16.msra.mxu0 %v1254
    %1760 = vmatprep.subr.bf16.mxu0 %v1259
    %1761 = vmatpush1.bf16.msra.mxu0 %v1258
    %1762 = vmatprep.subr.bf16.mxu0 %v1263
    %1763 = vmatpush1.bf16.msra.mxu0 %v1262
    %1764 = vmatprep.subr.bf16.mxu0 %v1267
    %1765 = vmatpush1.bf16.msra.mxu0 %v1266
    %1766 = vmatprep.subr.bf16.mxu0 %v1271
    %1767 = vmatpush1.bf16.msra.mxu0 %v1270
    %1768 = vmatprep.subr.bf16.mxu0 %v1275
    %1769 = vmatpush1.bf16.msra.mxu0 %v1274
    %1770 = vmatprep.mubr.bf16.mxu0 %v276
    %1771 = vmatmul.mubr.bf16.gmra.mrb[0].mxu0 %v275
    %v1772 = vpop.f32.mrb[0].mxu0
    %v1773 = vadd.f32 %v1730, %v1772
    %v1774 = vpop.f32.mrb[0].mxu0
    %v1775 = vadd.f32 %v1732, %v1774
    %v1776 = vpop.f32.mrb[0].mxu0
    %v1777 = vadd.f32 %v1734, %v1776
    %v1778 = vpop.f32.mrb[0].mxu0
    %v1779 = vadd.f32 %v1736, %v1778
    %1780 = vdwg.mxu0
    %1781 = vmatprep.subr.bf16.mxu0 %v1279
    %1782 = vmatpush1.bf16.msra.mxu0 %v1278
    %1783 = vmatprep.subr.bf16.mxu0 0
    %1784 = vmatpush1.bf16.msra.mxu0 0
    %1785 = vmatprep.subr.bf16.mxu0 0
    %1786 = vmatpush1.bf16.msra.mxu0 0
    %1787 = vmatprep.subr.bf16.mxu0 0
    %1788 = vmatpush1.bf16.msra.mxu0 0
    %1789 = vmatprep.subr.bf16.mxu0 0
    %1790 = vmatpush1.bf16.msra.mxu0 0
    %1791 = vmatprep.subr.bf16.mxu0 0
    %1792 = vmatpush1.bf16.msra.mxu0 0
    %1793 = vmatprep.subr.bf16.mxu0 0
    %1794 = vmatpush1.bf16.msra.mxu0 0
    %1795 = vmatprep.subr.bf16.mxu0 0
    %1796 = vmatpush1.bf16.msra.mxu0 0
    %1797 = vmatprep.subr.bf16.mxu0 0
    %1798 = vmatpush1.bf16.msra.mxu0 0
    %1799 = vmatprep.subr.bf16.mxu0 0
    %1800 = vmatpush1.bf16.msra.mxu0 0
    %1801 = vmatprep.subr.bf16.mxu0 0
    %1802 = vmatpush1.bf16.msra.mxu0 0
    %1803 = vmatprep.subr.bf16.mxu0 0
    %1804 = vmatpush1.bf16.msra.mxu0 0
    %1805 = vmatprep.subr.bf16.mxu0 0
    %1806 = vmatpush1.bf16.msra.mxu0 0
    %1807 = vmatprep.subr.bf16.mxu0 0
    %1808 = vmatpush1.bf16.msra.mxu0 0
    %1809 = vmatprep.subr.bf16.mxu0 0
    %1810 = vmatpush1.bf16.msra.mxu0 0
    %1811 = vmatprep.subr.bf16.mxu0 0
    %1812 = vmatpush1.bf16.msra.mxu0 0
    %1813 = vmatprep.mubr.bf16.mxu0 0
    %1814 = vmatmul.mubr.bf16.gmra.mrb[0].mxu0 %v1478
    %v1815 = vpop.f32.mrb[0].mxu0
    %v1816 = vadd.f32 %v1773, %v1815
    %v1817 = vpop.f32.mrb[0].mxu0
    %v1818 = vadd.f32 %v1775, %v1817
    %v1819 = vpop.f32.mrb[0].mxu0
    %v1820 = vadd.f32 %v1777, %v1819
    %v1821 = vpop.f32.mrb[0].mxu0
    %v1822 = vadd.f32 %v1779, %v1821
    %1823 = vdwg.mxu0
    %v1824 = vmax.f32 %v1644, 0.0
    %v1825 = vmax.f32 %v1646, 0.0
    %v1826 = vmax.f32 %v1816, 0.0
    %v1827 = vmax.f32 %v1818, 0.0
    %v1828 = vmax.f32 %v1648, 0.0
    %v1829 = vmax.f32 %v1650, 0.0
    %v1830 = vmax.f32 %v1820, 0.0
    %v1831 = vmax.f32 %v1822, 0.0
    %v1832 = vpack.c.bf16 %v1828, %v1824
    %v1833 = vpack.c.bf16 %v1829, %v1825
    %v1834 = vpack.c.bf16 %v1830, %v1826
    %v1835 = vpack.c.bf16 %v1831, %v1827
    %v1836 = vld [vmem:[#allocation7] sm:$0xff]
    %v1837 = vld [vmem:[#allocation7 + $0x8] sm:$0xf]
    %v1838 = vld [vmem:[#allocation7 + $0xc] sm:$0xff]
    %v1839 = vld [vmem:[#allocation7 + $0x14] sm:$0xf]
    %v1840 = vld [vmem:[#allocation7 + $0x18] sm:$0xff]
    %v1841 = vld [vmem:[#allocation7 + $0x20] sm:$0xf]
    %v1842 = vld [vmem:[#allocation7 + $0x24] sm:$0xff]
    %v1843 = vld [vmem:[#allocation7 + $0x2c] sm:$0xf]
    %v1844 = vld [vmem:[#allocation7 + $0x30] sm:$0xff]
    %v1845 = vld [vmem:[#allocation7 + $0x38] sm:$0xf]
    %v1846 = vld [vmem:[#allocation7 + $0x3c] sm:$0xff]
    %v1847 = vld [vmem:[#allocation7 + $0x44] sm:$0xf]
    %v1848 = vld [vmem:[#allocation7 + $0x48] sm:$0xff]
    %v1849 = vld [vmem:[#allocation7 + $0x50] sm:$0xf]
    %v1850 = vld [vmem:[#allocation7 + $0x54] sm:$0xff]
    %v1851 = vld [vmem:[#allocation7 + $0x5c] sm:$0xf]
    %v1852 = vld [vmem:[#allocation7 + $0x60] sm:$0xff]
    %v1853 = vld [vmem:[#allocation7 + $0x68] sm:$0xf]
    %v1854 = vld [vmem:[#allocation7 + $0x6c] sm:$0xff]
    %v1855 = vld [vmem:[#allocation7 + $0x74] sm:$0xf]
    %v1856 = vld [vmem:[#allocation7 + $0x78] sm:$0xff]
    %v1857 = vld [vmem:[#allocation7 + $0x80] sm:$0xf]
    %v1858 = vld [vmem:[#allocation7 + $0x84] sm:$0xff]
    %v1859 = vld [vmem:[#allocation7 + $0x8c] sm:$0xf]
    %v1860 = vld [vmem:[#allocation7 + $0x90] sm:$0xff]
    %v1861 = vld [vmem:[#allocation7 + $0x98] sm:$0xf]
    %v1862 = vld [vmem:[#allocation7 + $0x9c] sm:$0xff]
    %v1863 = vld [vmem:[#allocation7 + $0xa4] sm:$0xf]
    %v1864 = vld [vmem:[#allocation7 + $0xa8] sm:$0xff]
    %v1865 = vld [vmem:[#allocation7 + $0xb0] sm:$0xf]
    %v1866 = vld [vmem:[#allocation7 + $0xb4] sm:$0xff]
    %v1867 = vld [vmem:[#allocation7 + $0xbc] sm:$0xf]
    %v1868 = vld [vmem:[#allocation7 + $0xc0] sm:$0xff]
    %v1869 = vld [vmem:[#allocation7 + $0xc8] sm:$0xf]
    %v1870 = vld [vmem:[#allocation7 + $0xcc] sm:$0xff]
    %v1871 = vld [vmem:[#allocation7 + $0xd4] sm:$0xf]
    %v1872 = vld [vmem:[#allocation7 + $0xd8] sm:$0xff]
    %v1873 = vld [vmem:[#allocation7 + $0xe0] sm:$0xf]
    %v1874 = vld [vmem:[#allocation7 + $0xe4] sm:$0xff]
    %v1875 = vld [vmem:[#allocation7 + $0xec] sm:$0xf]
    %v1876 = vld [vmem:[#allocation7 + $0xf0] sm:$0xff]
    %v1877 = vld [vmem:[#allocation7 + $0xf8] sm:$0xf]
    %v1878 = vld [vmem:[#allocation7 + $0xfc] sm:$0xff]
    %v1879 = vld [vmem:[#allocation7 + $0x104] sm:$0xf]
    %v1880 = vld [vmem:[#allocation7 + $0x108] sm:$0xff]
    %v1881 = vld [vmem:[#allocation7 + $0x110] sm:$0xf]
    %v1882 = vld [vmem:[#allocation7 + $0x114] sm:$0xff]
    %v1883 = vld [vmem:[#allocation7 + $0x11c] sm:$0xf]
    %v1884 = vld [vmem:[#allocation7 + $0x120] sm:$0xff]
    %v1885 = vld [vmem:[#allocation7 + $0x128] sm:$0xf]
    %v1886 = vld [vmem:[#allocation7 + $0x12c] sm:$0xff]
    %v1887 = vld [vmem:[#allocation7 + $0x134] sm:$0xf]
    %v1888 = vld [vmem:[#allocation7 + $0x138] sm:$0xff]
    %v1889 = vld [vmem:[#allocation7 + $0x140] sm:$0xf]
    %v1890 = vld [vmem:[#allocation7 + $0x144] sm:$0xff]
    %v1891 = vld [vmem:[#allocation7 + $0x14c] sm:$0xf]
    %v1892 = vld [vmem:[#allocation7 + $0x150] sm:$0xff]
    %v1893 = vld [vmem:[#allocation7 + $0x158] sm:$0xf]
    %v1894 = vld [vmem:[#allocation7 + $0x15c] sm:$0xff]
    %v1895 = vld [vmem:[#allocation7 + $0x164] sm:$0xf]
    %v1896 = vld [vmem:[#allocation7 + $0x168] sm:$0xff]
    %v1897 = vld [vmem:[#allocation7 + $0x170] sm:$0xf]
    %v1898 = vld [vmem:[#allocation7 + $0x174] sm:$0xff]
    %v1899 = vld [vmem:[#allocation7 + $0x17c] sm:$0xf]
    %v1900 = vld [vmem:[#allocation7 + $0x180] sm:$0xff]
    %v1901 = vld [vmem:[#allocation7 + $0x188] sm:$0xf]
    %v1902 = vld [vmem:[#allocation7 + $0x18c] sm:$0xff]
    %v1903 = vld [vmem:[#allocation7 + $0x194] sm:$0xf]
    %v1904 = vld [vmem:[#allocation7 + $0x198] sm:$0xff]
    %v1905 = vld [vmem:[#allocation7 + $0x1a0] sm:$0xf]
    %v1906 = vld [vmem:[#allocation7 + $0x1a4] sm:$0xff]
    %v1907 = vld [vmem:[#allocation7 + $0x1ac] sm:$0xf]
    %v1908 = vld [vmem:[#allocation7 + $0x1b0] sm:$0xff]
    %v1909 = vld [vmem:[#allocation7 + $0x1b8] sm:$0xf]
    %v1910 = vld [vmem:[#allocation7 + $0x1bc] sm:$0xff]
    %v1911 = vld [vmem:[#allocation7 + $0x1c4] sm:$0xf]
    %v1912 = vld [vmem:[#allocation7 + $0x1c8] sm:$0xff]
    %v1913 = vld [vmem:[#allocation7 + $0x1d0] sm:$0xf]
    %v1914 = vld [vmem:[#allocation7 + $0x1d4] sm:$0xff]
    %v1915 = vld [vmem:[#allocation7 + $0x1dc] sm:$0xf]
    %v1916 = vld [vmem:[#allocation7 + $0x1e0] sm:$0xff]
    %v1917 = vld [vmem:[#allocation7 + $0x1e8] sm:$0xf]
    %v1918 = vld [vmem:[#allocation7 + $0x1ec] sm:$0xff]
    %v1919 = vld [vmem:[#allocation7 + $0x1f4] sm:$0xf]
    %v1920 = vld [vmem:[#allocation7 + $0x1f8] sm:$0xff]
    %v1921 = vld [vmem:[#allocation7 + $0x200] sm:$0xf]
    %v1922 = vld [vmem:[#allocation7 + $0x204] sm:$0xff]
    %v1923 = vld [vmem:[#allocation7 + $0x20c] sm:$0xf]
    %v1924 = vld [vmem:[#allocation7 + $0x210] sm:$0xff]
    %v1925 = vld [vmem:[#allocation7 + $0x218] sm:$0xf]
    %v1926 = vld [vmem:[#allocation7 + $0x21c] sm:$0xff]
    %v1927 = vld [vmem:[#allocation7 + $0x224] sm:$0xf]
    %v1928 = vld [vmem:[#allocation7 + $0x228] sm:$0xff]
    %v1929 = vld [vmem:[#allocation7 + $0x230] sm:$0xf]
    %v1930 = vld [vmem:[#allocation7 + $0x234] sm:$0xff]
    %v1931 = vld [vmem:[#allocation7 + $0x23c] sm:$0xf]
    %v1932 = vld [vmem:[#allocation7 + $0x240] sm:$0xff]
    %v1933 = vld [vmem:[#allocation7 + $0x248] sm:$0xf]
    %v1934 = vld [vmem:[#allocation7 + $0x24c] sm:$0xff]
    %v1935 = vld [vmem:[#allocation7 + $0x254] sm:$0xf]
    %v1936 = vld [vmem:[#allocation7 + $0x258] sm:$0xff]
    %v1937 = vld [vmem:[#allocation7 + $0x260] sm:$0xf]
    %v1938 = vld [vmem:[#allocation7 + $0x264] sm:$0xff]
    %v1939 = vld [vmem:[#allocation7 + $0x26c] sm:$0xf]
    %v1940 = vld [vmem:[#allocation7 + $0x270] sm:$0xff]
    %v1941 = vld [vmem:[#allocation7 + $0x278] sm:$0xf]
    %v1942 = vld [vmem:[#allocation7 + $0x27c] sm:$0xff]
    %v1943 = vld [vmem:[#allocation7 + $0x284] sm:$0xf]
    %v1944 = vld [vmem:[#allocation7 + $0x288] sm:$0xff]
    %v1945 = vld [vmem:[#allocation7 + $0x290] sm:$0xf]
    %v1946 = vld [vmem:[#allocation7 + $0x294] sm:$0xff]
    %v1947 = vld [vmem:[#allocation7 + $0x29c] sm:$0xf]
    %v1948 = vld [vmem:[#allocation7 + $0x2a0] sm:$0xff]
    %v1949 = vld [vmem:[#allocation7 + $0x2a8] sm:$0xf]
    %v1950 = vld [vmem:[#allocation7 + $0x2ac] sm:$0xff]
    %v1951 = vld [vmem:[#allocation7 + $0x2b4] sm:$0xf]
    %v1952 = vld [vmem:[#allocation7 + $0x2b8] sm:$0xff]
    %v1953 = vld [vmem:[#allocation7 + $0x2c0] sm:$0xf]
    %v1954 = vld [vmem:[#allocation7 + $0x2c4] sm:$0xff]
    %v1955 = vld [vmem:[#allocation7 + $0x2cc] sm:$0xf]
    %v1956 = vld [vmem:[#allocation7 + $0x2d0] sm:$0xff]
    %v1957 = vld [vmem:[#allocation7 + $0x2d8] sm:$0xf]
    %v1958 = vld [vmem:[#allocation7 + $0x2dc] sm:$0xff]
    %v1959 = vld [vmem:[#allocation7 + $0x2e4] sm:$0xf]
    %v1960 = vld [vmem:[#allocation7 + $0x2e8] sm:$0xff]
    %v1961 = vld [vmem:[#allocation7 + $0x2f0] sm:$0xf]
    %v1962 = vld [vmem:[#allocation7 + $0x2f4] sm:$0xff]
    %v1963 = vld [vmem:[#allocation7 + $0x2fc] sm:$0xf]
    %v1964 = vld [vmem:[%s4] sm:$0x7]
    %v1966 = vlaneseq
    %v1967 = vshrl.u32 %v1966, 7
    %v1968 = vsub.s32 0, %v1967
    %v1969 = vrot.slane %v1964, %v1968
    %v1970 = vlaneseq
    %v1971 = vshrl.u32 %v1970, 7
    %v1972 = vsub.s32 1, %v1971
    %v1973 = vrot.slane %v1964, %v1972
    %v1974 = vlaneseq
    %v1975 = vshrl.u32 %v1974, 7
    %v1976 = vsub.s32 2, %v1975
    %v1977 = vrot.slane %v1964, %v1976
    %v2109 = vunpack.c.l.b16 %v1836
    %v2110 = vunpack.c.h.b16 %v1836
    %v2111 = vunpack.c.l.b16 %v1837
    %v2112 = vunpack.c.l.b16 %v1838
    %v2113 = vunpack.c.h.b16 %v1838
    %v2114 = vunpack.c.l.b16 %v1839
    %v2115 = vunpack.c.l.b16 %v1840
    %v2116 = vunpack.c.h.b16 %v1840
    %v2117 = vunpack.c.l.b16 %v1841
    %v2118 = vunpack.c.l.b16 %v1842
    %v2119 = vunpack.c.h.b16 %v1842
    %v2120 = vunpack.c.l.b16 %v1843
    %v2121 = vunpack.c.l.b16 %v1844
    %v2122 = vunpack.c.h.b16 %v1844
    %v2123 = vunpack.c.l.b16 %v1845
    %v2124 = vunpack.c.l.b16 %v1846
    %v2125 = vunpack.c.h.b16 %v1846
    %v2126 = vunpack.c.l.b16 %v1847
    %v2127 = vunpack.c.l.b16 %v1848
    %v2128 = vunpack.c.h.b16 %v1848
    %v2129 = vunpack.c.l.b16 %v1849
    %v2130 = vunpack.c.l.b16 %v1850
    %v2131 = vunpack.c.h.b16 %v1850
    %v2132 = vunpack.c.l.b16 %v1851
    %v2133 = vunpack.c.l.b16 %v1852
    %v2134 = vunpack.c.h.b16 %v1852
    %v2135 = vunpack.c.l.b16 %v1853
    %v2136 = vunpack.c.l.b16 %v1854
    %v2137 = vunpack.c.h.b16 %v1854
    %v2138 = vunpack.c.l.b16 %v1855
    %v2139 = vunpack.c.l.b16 %v1856
    %v2140 = vunpack.c.h.b16 %v1856
    %v2141 = vunpack.c.l.b16 %v1857
    %v2142 = vunpack.c.l.b16 %v1858
    %v2143 = vunpack.c.h.b16 %v1858
    %v2144 = vunpack.c.l.b16 %v1859
    %v2145 = vunpack.c.l.b16 %v1860
    %v2146 = vunpack.c.h.b16 %v1860
    %v2147 = vunpack.c.l.b16 %v1861
    %v2148 = vunpack.c.l.b16 %v1862
    %v2149 = vunpack.c.h.b16 %v1862
    %v2150 = vunpack.c.l.b16 %v1863
    %v2151 = vunpack.c.l.b16 %v1864
    %v2152 = vunpack.c.h.b16 %v1864
    %v2153 = vunpack.c.l.b16 %v1865
    %v2154 = vunpack.c.l.b16 %v1866
    %v2155 = vunpack.c.h.b16 %v1866
    %v2156 = vunpack.c.l.b16 %v1867
    %v2157 = vunpack.c.l.b16 %v1868
    %v2158 = vunpack.c.h.b16 %v1868
    %v2159 = vunpack.c.l.b16 %v1869
    %v2160 = vunpack.c.l.b16 %v1870
    %v2161 = vunpack.c.h.b16 %v1870
    %v2162 = vunpack.c.l.b16 %v1871
    %v2163 = vunpack.c.l.b16 %v1872
    %v2164 = vunpack.c.h.b16 %v1872
    %v2165 = vunpack.c.l.b16 %v1873
    %v2166 = vunpack.c.l.b16 %v1874
    %v2167 = vunpack.c.h.b16 %v1874
    %v2168 = vunpack.c.l.b16 %v1875
    %v2169 = vunpack.c.l.b16 %v1876
    %v2170 = vunpack.c.h.b16 %v1876
    %v2171 = vunpack.c.l.b16 %v1877
    %v2172 = vunpack.c.l.b16 %v1878
    %v2173 = vunpack.c.h.b16 %v1878
    %v2174 = vunpack.c.l.b16 %v1879
    %v2175 = vunpack.c.l.b16 %v1880
    %v2176 = vunpack.c.h.b16 %v1880
    %v2177 = vunpack.c.l.b16 %v1881
    %v2178 = vunpack.c.l.b16 %v1882
    %v2179 = vunpack.c.h.b16 %v1882
    %v2180 = vunpack.c.l.b16 %v1883
    %v2181 = vunpack.c.l.b16 %v1884
    %v2182 = vunpack.c.h.b16 %v1884
    %v2183 = vunpack.c.l.b16 %v1885
    %v2184 = vunpack.c.l.b16 %v1886
    %v2185 = vunpack.c.h.b16 %v1886
    %v2186 = vunpack.c.l.b16 %v1887
    %v2187 = vunpack.c.l.b16 %v1888
    %v2188 = vunpack.c.h.b16 %v1888
    %v2189 = vunpack.c.l.b16 %v1889
    %v2190 = vunpack.c.l.b16 %v1890
    %v2191 = vunpack.c.h.b16 %v1890
    %v2192 = vunpack.c.l.b16 %v1891
    %v2193 = vunpack.c.l.b16 %v1892
    %v2194 = vunpack.c.h.b16 %v1892
    %v2195 = vunpack.c.l.b16 %v1893
    %v2196 = vunpack.c.l.b16 %v1894
    %v2197 = vunpack.c.h.b16 %v1894
    %v2198 = vunpack.c.l.b16 %v1895
    %v2199 = vunpack.c.l.b16 %v1896
    %v2200 = vunpack.c.h.b16 %v1896
    %v2201 = vunpack.c.l.b16 %v1897
    %v2202 = vunpack.c.l.b16 %v1898
    %v2203 = vunpack.c.h.b16 %v1898
    %v2204 = vunpack.c.l.b16 %v1899
    %v2205 = vunpack.c.l.b16 %v1900
    %v2206 = vunpack.c.h.b16 %v1900
    %v2207 = vunpack.c.l.b16 %v1901
    %v2208 = vunpack.c.l.b16 %v1902
    %v2209 = vunpack.c.h.b16 %v1902
    %v2210 = vunpack.c.l.b16 %v1903
    %v2211 = vunpack.c.l.b16 %v1904
    %v2212 = vunpack.c.h.b16 %v1904
    %v2213 = vunpack.c.l.b16 %v1905
    %v2214 = vunpack.c.l.b16 %v1906
    %v2215 = vunpack.c.h.b16 %v1906
    %v2216 = vunpack.c.l.b16 %v1907
    %v2217 = vunpack.c.l.b16 %v1908
    %v2218 = vunpack.c.h.b16 %v1908
    %v2219 = vunpack.c.l.b16 %v1909
    %v2220 = vunpack.c.l.b16 %v1910
    %v2221 = vunpack.c.h.b16 %v1910
    %v2222 = vunpack.c.l.b16 %v1911
    %v2223 = vunpack.c.l.b16 %v1912
    %v2224 = vunpack.c.h.b16 %v1912
    %v2225 = vunpack.c.l.b16 %v1913
    %v2226 = vunpack.c.l.b16 %v1914
    %v2227 = vunpack.c.h.b16 %v1914
    %v2228 = vunpack.c.l.b16 %v1915
    %v2229 = vunpack.c.l.b16 %v1916
    %v2230 = vunpack.c.h.b16 %v1916
    %v2231 = vunpack.c.l.b16 %v1917
    %v2232 = vunpack.c.l.b16 %v1918
    %v2233 = vunpack.c.h.b16 %v1918
    %v2234 = vunpack.c.l.b16 %v1919
    %v2235 = vunpack.c.l.b16 %v1920
    %v2236 = vunpack.c.h.b16 %v1920
    %v2237 = vunpack.c.l.b16 %v1921
    %v2238 = vunpack.c.l.b16 %v1922
    %v2239 = vunpack.c.h.b16 %v1922
    %v2240 = vunpack.c.l.b16 %v1923
    %v2241 = vunpack.c.l.b16 %v1924
    %v2242 = vunpack.c.h.b16 %v1924
    %v2243 = vunpack.c.l.b16 %v1925
    %v2244 = vunpack.c.l.b16 %v1926
    %v2245 = vunpack.c.h.b16 %v1926
    %v2246 = vunpack.c.l.b16 %v1927
    %v2247 = vunpack.c.l.b16 %v1928
    %v2248 = vunpack.c.h.b16 %v1928
    %v2249 = vunpack.c.l.b16 %v1929
    %v2250 = vunpack.c.l.b16 %v1930
    %v2251 = vunpack.c.h.b16 %v1930
    %v2252 = vunpack.c.l.b16 %v1931
    %v2253 = vunpack.c.l.b16 %v1932
    %v2254 = vunpack.c.h.b16 %v1932
    %v2255 = vunpack.c.l.b16 %v1933
    %v2256 = vunpack.c.l.b16 %v1934
    %v2257 = vunpack.c.h.b16 %v1934
    %v2258 = vunpack.c.l.b16 %v1935
    %v2259 = vunpack.c.l.b16 %v1936
    %v2260 = vunpack.c.h.b16 %v1936
    %v2261 = vunpack.c.l.b16 %v1937
    %v2262 = vunpack.c.l.b16 %v1938
    %v2263 = vunpack.c.h.b16 %v1938
    %v2264 = vunpack.c.l.b16 %v1939
    %v2265 = vunpack.c.l.b16 %v1940
    %v2266 = vunpack.c.h.b16 %v1940
    %v2267 = vunpack.c.l.b16 %v1941
    %v2268 = vunpack.c.l.b16 %v1942
    %v2269 = vunpack.c.h.b16 %v1942
    %v2270 = vunpack.c.l.b16 %v1943
    %v2271 = vunpack.c.l.b16 %v1944
    %v2272 = vunpack.c.h.b16 %v1944
    %v2273 = vunpack.c.l.b16 %v1945
    %v2274 = vunpack.c.l.b16 %v1946
    %v2275 = vunpack.c.h.b16 %v1946
    %v2276 = vunpack.c.l.b16 %v1947
    %v2277 = vunpack.c.l.b16 %v1948
    %v2278 = vunpack.c.h.b16 %v1948
    %v2279 = vunpack.c.l.b16 %v1949
    %v2280 = vunpack.c.l.b16 %v1950
    %v2281 = vunpack.c.h.b16 %v1950
    %v2282 = vunpack.c.l.b16 %v1951
    %v2283 = vunpack.c.l.b16 %v1952
    %v2284 = vunpack.c.h.b16 %v1952
    %v2285 = vunpack.c.l.b16 %v1953
    %v2286 = vunpack.c.l.b16 %v1954
    %v2287 = vunpack.c.h.b16 %v1954
    %v2288 = vunpack.c.l.b16 %v1955
    %v2289 = vunpack.c.l.b16 %v1956
    %v2290 = vunpack.c.h.b16 %v1956
    %v2291 = vunpack.c.l.b16 %v1957
    %v2292 = vunpack.c.l.b16 %v1958
    %v2293 = vunpack.c.h.b16 %v1958
    %v2294 = vunpack.c.l.b16 %v1959
    %v2295 = vunpack.c.l.b16 %v1960
    %v2296 = vunpack.c.h.b16 %v1960
    %v2297 = vunpack.c.l.b16 %v1961
    %v2298 = vunpack.c.l.b16 %v1962
    %v2299 = vunpack.c.h.b16 %v1962
    %v2300 = vunpack.c.l.b16 %v1963
    %v2301 = vpack.c.b16 %v2112, %v2109
    %v2302 = vpack.c.b16 %v2113, %v2110
    %v2303 = vpack.c.b16 %v2114, %v2111
    %v2304 = vpack.c.b16 %v2118, %v2115
    %v2305 = vpack.c.b16 %v2119, %v2116
    %v2306 = vpack.c.b16 %v2120, %v2117
    %v2307 = vpack.c.b16 %v2124, %v2121
    %v2308 = vpack.c.b16 %v2125, %v2122
    %v2309 = vpack.c.b16 %v2126, %v2123
    %v2310 = vpack.c.b16 %v2130, %v2127
    %v2311 = vpack.c.b16 %v2131, %v2128
    %v2312 = vpack.c.b16 %v2132, %v2129
    %v2313 = vpack.c.b16 %v2136, %v2133
    %v2314 = vpack.c.b16 %v2137, %v2134
    %v2315 = vpack.c.b16 %v2138, %v2135
    %v2316 = vpack.c.b16 %v2142, %v2139
    %v2317 = vpack.c.b16 %v2143, %v2140
    %v2318 = vpack.c.b16 %v2144, %v2141
    %v2319 = vpack.c.b16 %v2148, %v2145
    %v2320 = vpack.c.b16 %v2149, %v2146
    %v2321 = vpack.c.b16 %v2150, %v2147
    %v2322 = vpack.c.b16 %v2154, %v2151
    %v2323 = vpack.c.b16 %v2155, %v2152
    %v2324 = vpack.c.b16 %v2156, %v2153
    %v2325 = vpack.c.b16 %v2160, %v2157
    %v2326 = vpack.c.b16 %v2161, %v2158
    %v2327 = vpack.c.b16 %v2162, %v2159
    %v2328 = vpack.c.b16 %v2166, %v2163
    %v2329 = vpack.c.b16 %v2167, %v2164
    %v2330 = vpack.c.b16 %v2168, %v2165
    %v2331 = vpack.c.b16 %v2172, %v2169
    %v2332 = vpack.c.b16 %v2173, %v2170
    %v2333 = vpack.c.b16 %v2174, %v2171
    %v2334 = vpack.c.b16 %v2178, %v2175
    %v2335 = vpack.c.b16 %v2179, %v2176
    %v2336 = vpack.c.b16 %v2180, %v2177
    %v2337 = vpack.c.b16 %v2184, %v2181
    %v2338 = vpack.c.b16 %v2185, %v2182
    %v2339 = vpack.c.b16 %v2186, %v2183
    %v2340 = vpack.c.b16 %v2190, %v2187
    %v2341 = vpack.c.b16 %v2191, %v2188
    %v2342 = vpack.c.b16 %v2192, %v2189
    %v2343 = vpack.c.b16 %v2196, %v2193
    %v2344 = vpack.c.b16 %v2197, %v2194
    %v2345 = vpack.c.b16 %v2198, %v2195
    %v2346 = vpack.c.b16 %v2202, %v2199
    %v2347 = vpack.c.b16 %v2203, %v2200
    %v2348 = vpack.c.b16 %v2204, %v2201
    %v2349 = vpack.c.b16 %v2208, %v2205
    %v2350 = vpack.c.b16 %v2209, %v2206
    %v2351 = vpack.c.b16 %v2210, %v2207
    %v2352 = vpack.c.b16 %v2214, %v2211
    %v2353 = vpack.c.b16 %v2215, %v2212
    %v2354 = vpack.c.b16 %v2216, %v2213
    %v2355 = vpack.c.b16 %v2220, %v2217
    %v2356 = vpack.c.b16 %v2221, %v2218
    %v2357 = vpack.c.b16 %v2222, %v2219
    %v2358 = vpack.c.b16 %v2226, %v2223
    %v2359 = vpack.c.b16 %v2227, %v2224
    %v2360 = vpack.c.b16 %v2228, %v2225
    %v2361 = vpack.c.b16 %v2232, %v2229
    %v2362 = vpack.c.b16 %v2233, %v2230
    %v2363 = vpack.c.b16 %v2234, %v2231
    %v2364 = vpack.c.b16 %v2238, %v2235
    %v2365 = vpack.c.b16 %v2239, %v2236
    %v2366 = vpack.c.b16 %v2240, %v2237
    %v2367 = vpack.c.b16 %v2244, %v2241
    %v2368 = vpack.c.b16 %v2245, %v2242
    %v2369 = vpack.c.b16 %v2246, %v2243
    %v2370 = vpack.c.b16 %v2250, %v2247
    %v2371 = vpack.c.b16 %v2251, %v2248
    %v2372 = vpack.c.b16 %v2252, %v2249
    %v2373 = vpack.c.b16 %v2256, %v2253
    %v2374 = vpack.c.b16 %v2257, %v2254
    %v2375 = vpack.c.b16 %v2258, %v2255
    %v2376 = vpack.c.b16 %v2262, %v2259
    %v2377 = vpack.c.b16 %v2263, %v2260
    %v2378 = vpack.c.b16 %v2264, %v2261
    %v2379 = vpack.c.b16 %v2268, %v2265
    %v2380 = vpack.c.b16 %v2269, %v2266
    %v2381 = vpack.c.b16 %v2270, %v2267
    %v2382 = vpack.c.b16 %v2274, %v2271
    %v2383 = vpack.c.b16 %v2275, %v2272
    %v2384 = vpack.c.b16 %v2276, %v2273
    %v2385 = vpack.c.b16 %v2280, %v2277
    %v2386 = vpack.c.b16 %v2281, %v2278
    %v2387 = vpack.c.b16 %v2282, %v2279
    %v2388 = vpack.c.b16 %v2286, %v2283
    %v2389 = vpack.c.b16 %v2287, %v2284
    %v2390 = vpack.c.b16 %v2288, %v2285
    %v2391 = vpack.c.b16 %v2292, %v2289
    %v2392 = vpack.c.b16 %v2293, %v2290
    %v2393 = vpack.c.b16 %v2294, %v2291
    %v2394 = vpack.c.b16 %v2298, %v2295
    %v2395 = vpack.c.b16 %v2299, %v2296
    %v2396 = vpack.c.b16 %v2300, %v2297
    %2493 = vmatprep.subr.bf16.mxu0 %v2302
    %2494 = vmatpush1.bf16.msra.mxu0 %v2301
    %2495 = vmatprep.subr.bf16.mxu0 %v2305
    %2496 = vmatpush1.bf16.msra.mxu0 %v2304
    %2497 = vmatprep.subr.bf16.mxu0 %v2308
    %2498 = vmatpush1.bf16.msra.mxu0 %v2307
    %2499 = vmatprep.subr.bf16.mxu0 %v2311
    %2500 = vmatpush1.bf16.msra.mxu0 %v2310
    %2501 = vmatprep.subr.bf16.mxu0 %v2314
    %2502 = vmatpush1.bf16.msra.mxu0 %v2313
    %2503 = vmatprep.subr.bf16.mxu0 %v2317
    %2504 = vmatpush1.bf16.msra.mxu0 %v2316
    %2505 = vmatprep.subr.bf16.mxu0 %v2320
    %2506 = vmatpush1.bf16.msra.mxu0 %v2319
    %2507 = vmatprep.subr.bf16.mxu0 %v2323
    %2508 = vmatpush1.bf16.msra.mxu0 %v2322
    %2509 = vmatprep.subr.bf16.mxu0 %v2326
    %2510 = vmatpush1.bf16.msra.mxu0 %v2325
    %2511 = vmatprep.subr.bf16.mxu0 %v2329
    %2512 = vmatpush1.bf16.msra.mxu0 %v2328
    %2513 = vmatprep.subr.bf16.mxu0 %v2332
    %2514 = vmatpush1.bf16.msra.mxu0 %v2331
    %2515 = vmatprep.subr.bf16.mxu0 %v2335
    %2516 = vmatpush1.bf16.msra.mxu0 %v2334
    %2517 = vmatprep.subr.bf16.mxu0 %v2338
    %2518 = vmatpush1.bf16.msra.mxu0 %v2337
    %2519 = vmatprep.subr.bf16.mxu0 %v2341
    %2520 = vmatpush1.bf16.msra.mxu0 %v2340
    %2521 = vmatprep.subr.bf16.mxu0 %v2344
    %2522 = vmatpush1.bf16.msra.mxu0 %v2343
    %2523 = vmatprep.subr.bf16.mxu0 %v2347
    %2524 = vmatpush1.bf16.msra.mxu0 %v2346
    %2525 = vmatprep.mubr.bf16.mxu0 %v1833
    %2526 = vmatmul.mubr.bf16.gmra.mrb[0].mxu0 %v1832
    %v2527 = vpop.f32.mrb[0].mxu0
    %v2528 = vadd.f32 %v1969, %v2527
    %v2529 = vpop.f32.mrb[0].mxu0
    %v2530 = vadd.f32 %v1973, %v2529
    %v2531 = vpop.f32.mrb[0].mxu0
    %v2532 = vadd.f32 %v1969, %v2531
    %v2533 = vpop.f32.mrb[0].mxu0
    %v2534 = vadd.f32 %v1973, %v2533
    %2535 = vdwg.mxu0
    %2536 = vmatprep.subr.bf16.mxu0 %v2350
    %2537 = vmatpush1.bf16.msra.mxu0 %v2349
    %2538 = vmatprep.subr.bf16.mxu0 %v2353
    %2539 = vmatpush1.bf16.msra.mxu0 %v2352
    %2540 = vmatprep.subr.bf16.mxu0 %v2356
    %2541 = vmatpush1.bf16.msra.mxu0 %v2355
    %2542 = vmatprep.subr.bf16.mxu0 %v2359
    %2543 = vmatpush1.bf16.msra.mxu0 %v2358
    %2544 = vmatprep.subr.bf16.mxu0 %v2362
    %2545 = vmatpush1.bf16.msra.mxu0 %v2361
    %2546 = vmatprep.subr.bf16.mxu0 %v2365
    %2547 = vmatpush1.bf16.msra.mxu0 %v2364
    %2548 = vmatprep.subr.bf16.mxu0 %v2368
    %2549 = vmatpush1.bf16.msra.mxu0 %v2367
    %2550 = vmatprep.subr.bf16.mxu0 %v2371
    %2551 = vmatpush1.bf16.msra.mxu0 %v2370
    %2552 = vmatprep.subr.bf16.mxu0 %v2374
    %2553 = vmatpush1.bf16.msra.mxu0 %v2373
    %2554 = vmatprep.subr.bf16.mxu0 %v2377
    %2555 = vmatpush1.bf16.msra.mxu0 %v2376
    %2556 = vmatprep.subr.bf16.mxu0 %v2380
    %2557 = vmatpush1.bf16.msra.mxu0 %v2379
    %2558 = vmatprep.subr.bf16.mxu0 %v2383
    %2559 = vmatpush1.bf16.msra.mxu0 %v2382
    %2560 = vmatprep.subr.bf16.mxu0 %v2386
    %2561 = vmatpush1.bf16.msra.mxu0 %v2385
    %2562 = vmatprep.subr.bf16.mxu0 %v2389
    %2563 = vmatpush1.bf16.msra.mxu0 %v2388
    %2564 = vmatprep.subr.bf16.mxu0 %v2392
    %2565 = vmatpush1.bf16.msra.mxu0 %v2391
    %2566 = vmatprep.subr.bf16.mxu0 %v2395
    %2567 = vmatpush1.bf16.msra.mxu0 %v2394
    %2568 = vmatprep.mubr.bf16.mxu0 %v1835
    %2569 = vmatmul.mubr.bf16.gmra.mrb[0].mxu0 %v1834
    %v2570 = vpop.f32.mrb[0].mxu0
    %v2571 = vadd.f32 %v2528, %v2570
    %v2572 = vpop.f32.mrb[0].mxu0
    %v2573 = vadd.f32 %v2530, %v2572
    %v2574 = vpop.f32.mrb[0].mxu0
    %v2575 = vadd.f32 %v2532, %v2574
    %v2576 = vpop.f32.mrb[0].mxu0
    %v2577 = vadd.f32 %v2534, %v2576
    %2578 = vdwg.mxu0
    %2579 = vmatprep.subr.bf16.mxu0 0
    %2580 = vmatpush1.bf16.msra.mxu0 %v2303
    %2581 = vmatprep.subr.bf16.mxu0 0
    %2582 = vmatpush1.bf16.msra.mxu0 %v2306
    %2583 = vmatprep.subr.bf16.mxu0 0
    %2584 = vmatpush1.bf16.msra.mxu0 %v2309
    %2585 = vmatprep.subr.bf16.mxu0 0
    %2586 = vmatpush1.bf16.msra.mxu0 %v2312
    %2587 = vmatprep.subr.bf16.mxu0 0
    %2588 = vmatpush1.bf16.msra.mxu0 %v2315
    %2589 = vmatprep.subr.bf16.mxu0 0
    %2590 = vmatpush1.bf16.msra.mxu0 %v2318
    %2591 = vmatprep.subr.bf16.mxu0 0
    %2592 = vmatpush1.bf16.msra.mxu0 %v2321
    %2593 = vmatprep.subr.bf16.mxu0 0
    %2594 = vmatpush1.bf16.msra.mxu0 %v2324
    %2595 = vmatprep.subr.bf16.mxu0 0
    %2596 = vmatpush1.bf16.msra.mxu0 %v2327
    %2597 = vmatprep.subr.bf16.mxu0 0
    %2598 = vmatpush1.bf16.msra.mxu0 %v2330
    %2599 = vmatprep.subr.bf16.mxu0 0
    %2600 = vmatpush1.bf16.msra.mxu0 %v2333
    %2601 = vmatprep.subr.bf16.mxu0 0
    %2602 = vmatpush1.bf16.msra.mxu0 %v2336
    %2603 = vmatprep.subr.bf16.mxu0 0
    %2604 = vmatpush1.bf16.msra.mxu0 %v2339
    %2605 = vmatprep.subr.bf16.mxu0 0
    %2606 = vmatpush1.bf16.msra.mxu0 %v2342
    %2607 = vmatprep.subr.bf16.mxu0 0
    %2608 = vmatpush1.bf16.msra.mxu0 %v2345
    %2609 = vmatprep.subr.bf16.mxu0 0
    %2610 = vmatpush1.bf16.msra.mxu0 %v2348
    %2611 = vmatprep.mubr.bf16.mxu0 %v1833
    %2612 = vmatmul.mubr.bf16.gmra.mrb[0].mxu0 %v1832
    %v2613 = vpop.f32.mrb[0].mxu0
    %v2614 = vadd.f32 %v1977, %v2613
    %v2615 = vpop.f32.mrb[0].mxu0
    %v2616 = vpop.f32.mrb[0].mxu0
    %v2617 = vadd.f32 %v1977, %v2616
    %v2618 = vpop.f32.mrb[0].mxu0
    %2619 = vdwg.mxu0
    %2620 = vmatprep.subr.bf16.mxu0 0
    %2621 = vmatpush1.bf16.msra.mxu0 %v2351
    %2622 = vmatprep.subr.bf16.mxu0 0
    %2623 = vmatpush1.bf16.msra.mxu0 %v2354
    %2624 = vmatprep.subr.bf16.mxu0 0
    %2625 = vmatpush1.bf16.msra.mxu0 %v2357
    %2626 = vmatprep.subr.bf16.mxu0 0
    %2627 = vmatpush1.bf16.msra.mxu0 %v2360
    %2628 = vmatprep.subr.bf16.mxu0 0
    %2629 = vmatpush1.bf16.msra.mxu0 %v2363
    %2630 = vmatprep.subr.bf16.mxu0 0
    %2631 = vmatpush1.bf16.msra.mxu0 %v2366
    %2632 = vmatprep.subr.bf16.mxu0 0
    %2633 = vmatpush1.bf16.msra.mxu0 %v2369
    %2634 = vmatprep.subr.bf16.mxu0 0
    %2635 = vmatpush1.bf16.msra.mxu0 %v2372
    %2636 = vmatprep.subr.bf16.mxu0 0
    %2637 = vmatpush1.bf16.msra.mxu0 %v2375
    %2638 = vmatprep.subr.bf16.mxu0 0
    %2639 = vmatpush1.bf16.msra.mxu0 %v2378
    %2640 = vmatprep.subr.bf16.mxu0 0
    %2641 = vmatpush1.bf16.msra.mxu0 %v2381
    %2642 = vmatprep.subr.bf16.mxu0 0
    %2643 = vmatpush1.bf16.msra.mxu0 %v2384
    %2644 = vmatprep.subr.bf16.mxu0 0
    %2645 = vmatpush1.bf16.msra.mxu0 %v2387
    %2646 = vmatprep.subr.bf16.mxu0 0
    %2647 = vmatpush1.bf16.msra.mxu0 %v2390
    %2648 = vmatprep.subr.bf16.mxu0 0
    %2649 = vmatpush1.bf16.msra.mxu0 %v2393
    %2650 = vmatprep.subr.bf16.mxu0 0
    %2651 = vmatpush1.bf16.msra.mxu0 %v2396
    %2652 = vmatprep.mubr.bf16.mxu0 %v1835
    %2653 = vmatmul.mubr.bf16.gmra.mrb[0].mxu0 %v1834
    %v2654 = vpop.f32.mrb[0].mxu0
    %v2655 = vadd.f32 %v2614, %v2654
    %v2656 = vpop.f32.mrb[0].mxu0
    %v2657 = vpop.f32.mrb[0].mxu0
    %v2658 = vadd.f32 %v2617, %v2657
    %v2659 = vpop.f32.mrb[0].mxu0
    %2660 = vdwg.mxu0
    %v2661 = vmax.f32 %v2571, 0.0
    %v2662 = vmax.f32 %v2573, 0.0
    %v2663 = vmax.f32 %v2655, 0.0
    %v2664 = vmax.f32 %v2575, 0.0
    %v2665 = vmax.f32 %v2577, 0.0
    %v2666 = vmax.f32 %v2658, 0.0
    %v2667 = vpack.c.bf16 %v2664, %v2661
    %v2668 = vpack.c.bf16 %v2665, %v2662
    %v2669 = vpack.c.bf16 %v2666, %v2663
    %v2670 = vld [vmem:[#allocation8] sm:$0xf]
    %v2671 = vld [vmem:[#allocation8 + $0x4] sm:$0xf]
    %v2672 = vld [vmem:[#allocation8 + $0x8] sm:$0xf]
    %v2673 = vld [vmem:[#allocation8 + $0xc] sm:$0xf]
    %v2674 = vld [vmem:[#allocation8 + $0x10] sm:$0xf]
    %v2675 = vld [vmem:[#allocation8 + $0x14] sm:$0xf]
    %v2676 = vld [vmem:[#allocation8 + $0x18] sm:$0xf]
    %v2677 = vld [vmem:[#allocation8 + $0x1c] sm:$0xf]
    %v2678 = vld [vmem:[#allocation8 + $0x20] sm:$0xf]
    %v2679 = vld [vmem:[#allocation8 + $0x24] sm:$0xf]
    %v2680 = vld [vmem:[#allocation8 + $0x28] sm:$0xf]
    %v2681 = vld [vmem:[#allocation8 + $0x2c] sm:$0xf]
    %v2682 = vld [vmem:[#allocation8 + $0x30] sm:$0xf]
    %v2683 = vld [vmem:[#allocation8 + $0x34] sm:$0xf]
    %v2684 = vld [vmem:[#allocation8 + $0x38] sm:$0xf]
    %v2685 = vld [vmem:[#allocation8 + $0x3c] sm:$0xf]
    %v2686 = vld [vmem:[#allocation8 + $0x40] sm:$0xf]
    %v2687 = vld [vmem:[#allocation8 + $0x44] sm:$0xf]
    %v2688 = vld [vmem:[#allocation8 + $0x48] sm:$0xf]
    %v2689 = vld [vmem:[#allocation8 + $0x4c] sm:$0xf]
    %v2690 = vld [vmem:[#allocation8 + $0x50] sm:$0xf]
    %v2691 = vld [vmem:[#allocation8 + $0x54] sm:$0xf]
    %v2692 = vld [vmem:[#allocation8 + $0x58] sm:$0xf]
    %v2693 = vld [vmem:[#allocation8 + $0x5c] sm:$0xf]
    %v2694 = vld [vmem:[#allocation8 + $0x60] sm:$0xf]
    %v2695 = vld [vmem:[#allocation8 + $0x64] sm:$0xf]
    %v2696 = vld [vmem:[#allocation8 + $0x68] sm:$0xf]
    %v2697 = vld [vmem:[#allocation8 + $0x6c] sm:$0xf]
    %v2698 = vld [vmem:[#allocation8 + $0x70] sm:$0xf]
    %v2699 = vld [vmem:[#allocation8 + $0x74] sm:$0xf]
    %v2700 = vld [vmem:[#allocation8 + $0x78] sm:$0xf]
    %v2701 = vld [vmem:[#allocation8 + $0x7c] sm:$0xf]
    %v2702 = vld [vmem:[#allocation8 + $0x80] sm:$0xf]
    %v2703 = vld [vmem:[#allocation8 + $0x84] sm:$0xf]
    %v2704 = vld [vmem:[#allocation8 + $0x88] sm:$0xf]
    %v2705 = vld [vmem:[#allocation8 + $0x8c] sm:$0xf]
    %v2706 = vld [vmem:[#allocation8 + $0x90] sm:$0xf]
    %v2707 = vld [vmem:[#allocation8 + $0x94] sm:$0xf]
    %v2708 = vld [vmem:[#allocation8 + $0x98] sm:$0xf]
    %v2709 = vld [vmem:[#allocation8 + $0x9c] sm:$0xf]
    %v2710 = vld [vmem:[#allocation8 + $0xa0] sm:$0xf]
    %v2711 = vld [vmem:[#allocation8 + $0xa4] sm:$0xf]
    %v2712 = vld [vmem:[#allocation8 + $0xa8] sm:$0xf]
    %v2713 = vld [vmem:[#allocation8 + $0xac] sm:$0xf]
    %v2714 = vld [vmem:[#allocation8 + $0xb0] sm:$0xf]
    %v2715 = vld [vmem:[#allocation8 + $0xb4] sm:$0xf]
    %v2716 = vld [vmem:[#allocation8 + $0xb8] sm:$0xf]
    %v2717 = vld [vmem:[#allocation8 + $0xbc] sm:$0xf]
    %v2718 = vld [vmem:[%s6] sm:$0x1]
    %v2720 = vlaneseq
    %v2721 = vshrl.u32 %v2720, 7
    %v2722 = vsub.s32 0, %v2721
    %v2723 = vrot.slane %v2718, %v2722
    %v2773 = vunpack.c.l.b16 %v2670
    %v2774 = vunpack.c.l.b16 %v2671
    %v2775 = vunpack.c.l.b16 %v2672
    %v2776 = vunpack.c.l.b16 %v2673
    %v2777 = vunpack.c.l.b16 %v2674
    %v2778 = vunpack.c.l.b16 %v2675
    %v2779 = vunpack.c.l.b16 %v2676
    %v2780 = vunpack.c.l.b16 %v2677
    %v2781 = vunpack.c.l.b16 %v2678
    %v2782 = vunpack.c.l.b16 %v2679
    %v2783 = vunpack.c.l.b16 %v2680
    %v2784 = vunpack.c.l.b16 %v2681
    %v2785 = vunpack.c.l.b16 %v2682
    %v2786 = vunpack.c.l.b16 %v2683
    %v2787 = vunpack.c.l.b16 %v2684
    %v2788 = vunpack.c.l.b16 %v2685
    %v2789 = vunpack.c.l.b16 %v2686
    %v2790 = vunpack.c.l.b16 %v2687
    %v2791 = vunpack.c.l.b16 %v2688
    %v2792 = vunpack.c.l.b16 %v2689
    %v2793 = vunpack.c.l.b16 %v2690
    %v2794 = vunpack.c.l.b16 %v2691
    %v2795 = vunpack.c.l.b16 %v2692
    %v2796 = vunpack.c.l.b16 %v2693
    %v2797 = vunpack.c.l.b16 %v2694
    %v2798 = vunpack.c.l.b16 %v2695
    %v2799 = vunpack.c.l.b16 %v2696
    %v2800 = vunpack.c.l.b16 %v2697
    %v2801 = vunpack.c.l.b16 %v2698
    %v2802 = vunpack.c.l.b16 %v2699
    %v2803 = vunpack.c.l.b16 %v2700
    %v2804 = vunpack.c.l.b16 %v2701
    %v2805 = vunpack.c.l.b16 %v2702
    %v2806 = vunpack.c.l.b16 %v2703
    %v2807 = vunpack.c.l.b16 %v2704
    %v2808 = vunpack.c.l.b16 %v2705
    %v2809 = vunpack.c.l.b16 %v2706
    %v2810 = vunpack.c.l.b16 %v2707
    %v2811 = vunpack.c.l.b16 %v2708
    %v2812 = vunpack.c.l.b16 %v2709
    %v2813 = vunpack.c.l.b16 %v2710
    %v2814 = vunpack.c.l.b16 %v2711
    %v2815 = vunpack.c.l.b16 %v2712
    %v2816 = vunpack.c.l.b16 %v2713
    %v2817 = vunpack.c.l.b16 %v2714
    %v2818 = vunpack.c.l.b16 %v2715
    %v2819 = vunpack.c.l.b16 %v2716
    %v2820 = vunpack.c.l.b16 %v2717
    %v2821 = vpack.c.b16 %v2774, %v2773
    %v2822 = vpack.c.b16 %v2776, %v2775
    %v2823 = vpack.c.b16 %v2778, %v2777
    %v2824 = vpack.c.b16 %v2780, %v2779
    %v2825 = vpack.c.b16 %v2782, %v2781
    %v2826 = vpack.c.b16 %v2784, %v2783
    %v2827 = vpack.c.b16 %v2786, %v2785
    %v2828 = vpack.c.b16 %v2788, %v2787
    %v2829 = vpack.c.b16 %v2790, %v2789
    %v2830 = vpack.c.b16 %v2792, %v2791
    %v2831 = vpack.c.b16 %v2794, %v2793
    %v2832 = vpack.c.b16 %v2796, %v2795
    %v2833 = vpack.c.b16 %v2798, %v2797
    %v2834 = vpack.c.b16 %v2800, %v2799
    %v2835 = vpack.c.b16 %v2802, %v2801
    %v2836 = vpack.c.b16 %v2804, %v2803
    %v2837 = vpack.c.b16 %v2806, %v2805
    %v2838 = vpack.c.b16 %v2808, %v2807
    %v2839 = vpack.c.b16 %v2810, %v2809
    %v2840 = vpack.c.b16 %v2812, %v2811
    %v2841 = vpack.c.b16 %v2814, %v2813
    %v2842 = vpack.c.b16 %v2816, %v2815
    %v2843 = vpack.c.b16 %v2818, %v2817
    %v2844 = vpack.c.b16 %v2820, %v2819
    %2869 = vmatprep.subr.bf16.mxu0 0
    %2870 = vmatpush1.bf16.msra.mxu0 %v2821
    %2871 = vmatprep.subr.bf16.mxu0 0
    %2872 = vmatpush1.bf16.msra.mxu0 %v2822
    %2873 = vmatprep.subr.bf16.mxu0 0
    %2874 = vmatpush1.bf16.msra.mxu0 %v2823
    %2875 = vmatprep.subr.bf16.mxu0 0
    %2876 = vmatpush1.bf16.msra.mxu0 %v2824
    %2877 = vmatprep.subr.bf16.mxu0 0
    %2878 = vmatpush1.bf16.msra.mxu0 %v2825
    %2879 = vmatprep.subr.bf16.mxu0 0
    %2880 = vmatpush1.bf16.msra.mxu0 %v2826
    %2881 = vmatprep.subr.bf16.mxu0 0
    %2882 = vmatpush1.bf16.msra.mxu0 %v2827
    %2883 = vmatprep.subr.bf16.mxu0 0
    %2884 = vmatpush1.bf16.msra.mxu0 %v2828
    %2885 = vmatprep.subr.bf16.mxu0 0
    %2886 = vmatpush1.bf16.msra.mxu0 %v2829
    %2887 = vmatprep.subr.bf16.mxu0 0
    %2888 = vmatpush1.bf16.msra.mxu0 %v2830
    %2889 = vmatprep.subr.bf16.mxu0 0
    %2890 = vmatpush1.bf16.msra.mxu0 %v2831
    %2891 = vmatprep.subr.bf16.mxu0 0
    %2892 = vmatpush1.bf16.msra.mxu0 %v2832
    %2893 = vmatprep.subr.bf16.mxu0 0
    %2894 = vmatpush1.bf16.msra.mxu0 %v2833
    %2895 = vmatprep.subr.bf16.mxu0 0
    %2896 = vmatpush1.bf16.msra.mxu0 %v2834
    %2897 = vmatprep.subr.bf16.mxu0 0
    %2898 = vmatpush1.bf16.msra.mxu0 %v2835
    %2899 = vmatprep.subr.bf16.mxu0 0
    %2900 = vmatpush1.bf16.msra.mxu0 %v2836
    %2901 = vmatprep.mubr.bf16.mxu0 %v2668
    %2902 = vmatmul.mubr.bf16.gmra.mrb[0].mxu0 %v2667
    %v2903 = vpop.f32.mrb[0].mxu0
    %v2904 = vadd.f32 %v2723, %v2903
    %v2905 = vpop.f32.mrb[0].mxu0
    %v2906 = vpop.f32.mrb[0].mxu0
    %v2907 = vadd.f32 %v2723, %v2906
    %v2908 = vpop.f32.mrb[0].mxu0
    %2909 = vdwg.mxu0
    %2910 = vmatprep.subr.bf16.mxu0 0
    %2911 = vmatpush1.bf16.msra.mxu0 %v2837
    %2912 = vmatprep.subr.bf16.mxu0 0
    %2913 = vmatpush1.bf16.msra.mxu0 %v2838
    %2914 = vmatprep.subr.bf16.mxu0 0
    %2915 = vmatpush1.bf16.msra.mxu0 %v2839
    %2916 = vmatprep.subr.bf16.mxu0 0
    %2917 = vmatpush1.bf16.msra.mxu0 %v2840
    %2918 = vmatprep.subr.bf16.mxu0 0
    %2919 = vmatpush1.bf16.msra.mxu0 %v2841
    %2920 = vmatprep.subr.bf16.mxu0 0
    %2921 = vmatpush1.bf16.msra.mxu0 %v2842
    %2922 = vmatprep.subr.bf16.mxu0 0
    %2923 = vmatpush1.bf16.msra.mxu0 %v2843
    %2924 = vmatprep.subr.bf16.mxu0 0
    %2925 = vmatpush1.bf16.msra.mxu0 %v2844
    %2926 = vmatprep.subr.bf16.mxu0 0
    %2927 = vmatpush1.bf16.msra.mxu0 0
    %2928 = vmatprep.subr.bf16.mxu0 0
    %2929 = vmatpush1.bf16.msra.mxu0 0
    %2930 = vmatprep.subr.bf16.mxu0 0
    %2931 = vmatpush1.bf16.msra.mxu0 0
    %2932 = vmatprep.subr.bf16.mxu0 0
    %2933 = vmatpush1.bf16.msra.mxu0 0
    %2934 = vmatprep.subr.bf16.mxu0 0
    %2935 = vmatpush1.bf16.msra.mxu0 0
    %2936 = vmatprep.subr.bf16.mxu0 0
    %2937 = vmatpush1.bf16.msra.mxu0 0
    %2938 = vmatprep.subr.bf16.mxu0 0
    %2939 = vmatpush1.bf16.msra.mxu0 0
    %2940 = vmatprep.subr.bf16.mxu0 0
    %2941 = vmatpush1.bf16.msra.mxu0 0
    %2942 = vmatprep.mubr.bf16.mxu0 0
    %2943 = vmatmul.mubr.bf16.gmra.mrb[0].mxu0 %v2669
    %v2944 = vpop.f32.mrb[0].mxu0
    %v2945 = vadd.f32 %v2904, %v2944
    %v2946 = vpop.f32.mrb[0].mxu0
    %v2947 = vpop.f32.mrb[0].mxu0
    %v2948 = vadd.f32 %v2907, %v2947
    %v2949 = vpop.f32.mrb[0].mxu0
    %2950 = vdwg.mxu0
    %2951 = vst [vmem:[#allocation10] sm:$0xff] %v2945
    %2952 = vst [vmem:[#allocation10 + $0x8] sm:$0xff] %v2948
    // Predicated region
    $region46: #{tpu_custom_call.1} parent=1 // pred_check
      _
    $region47: #{tpu_custom_call.1} parent=1 // pred_check_branch
      %2954 = sbr.rel (0) target = $region49
    $region48: #{tpu_custom_call.1} parent=1 // pred_region
      %s2956 = ssub.s32 256, 32
      %2957 = vsyncadd [#allocation4], %s2956
      %s2958 = sshll.u32 [#allocation10], 4
      %s2959 = int_to_ptr.vmem [resolvable:$true] %s2958
      %2964 = dma.vmem_to_hbm [thread:$0]  %s2959, 32, %s7, [#allocation4], 32, 32, 2
    $region49: #{tpu_custom_call.1} parent=1 // pred_fallthru
      _
    // Predicated region
    $region50: #{tpu_custom_call.1} parent=1 // pred_check
      _
    $region51: #{tpu_custom_call.1} parent=1 // pred_check_branch
      %2966 = sbr.rel (0) target = $region53
    $region52: #{tpu_custom_call.1} parent=1 // pred_region
      %2967 = dma.done [#allocation4], 256
    $region53: #{tpu_custom_call.1} parent=1 // pred_fallthru
      _
    %2968 = vsyncpa [#allocation3], 1
    %2969 = vsyncpa [#allocation6], 1
    %2970 = vsyncpa [#allocation9], 1
    %2971 = vsyncpa [#allocation4], 1

</llo_original>
